<compile_context>
chip_gen: v6e
topology: v6e:2x2x1
jax: 0.10.0
libtpu: 0.0.40
codegen_flags: <defaults>
</compile_context>

<pallas_src>
import functools

import jax
import jax.numpy as jnp
from jax import lax
from jax.experimental import pallas as pl
from jax.experimental.pallas import tpu as pltpu


# ----------------------------- pose algebra (plain JAX glue) -----------------

def quat2mat(q):
    """Quaternion [w, x, y, z] -> 4x4 homogeneous rotation matrix."""
    q = q / jnp.linalg.norm(q)
    w, x, y, z = q[0], q[1], q[2], q[3]
    row0 = jnp.stack([1 - 2 * y * y - 2 * z * z, 2 * x * y - 2 * z * w,
                      2 * x * z + 2 * y * w, jnp.float32(0.0)])
    row1 = jnp.stack([2 * x * y + 2 * z * w, 1 - 2 * x * x - 2 * z * z,
                      2 * y * z - 2 * x * w, jnp.float32(0.0)])
    row2 = jnp.stack([2 * x * z - 2 * y * w, 2 * y * z + 2 * x * w,
                      1 - 2 * x * x - 2 * y * y, jnp.float32(0.0)])
    row3 = jnp.array([0.0, 0.0, 0.0, 1.0], dtype=jnp.float32)
    return jnp.stack([row0, row1, row2, row3]).astype(jnp.float32)


def tvector2mat(t):
    """Translation vector [3] -> 4x4 homogeneous translation matrix."""
    m = jnp.eye(4, dtype=jnp.float32)
    return m.at[0, 3].set(t[0]).at[1, 3].set(t[1]).at[2, 3].set(t[2])


def _build_inv_rt_total(tt, tr, te, re_):
    """M = inv(RT_total) = inv(inv(RT_target) @ RT_pred), as in the reference."""
    rt_target = tvector2mat(tt) @ quat2mat(tr)
    rt_pred = tvector2mat(te) @ quat2mat(re_)
    rt_total = jnp.linalg.inv(rt_target) @ rt_pred
    return jnp.linalg.inv(rt_total)


# ------------------------------ Pallas kernel --------------------------------

def _points_dist_kernel(a_ref, pc_ref, out_ref, *, rows_per_block, chunk_rows,
                        j_inner, total_rows, needs_mask):
    # a_ref  : (B, 12) f32 in SMEM — rows 0..2 of (M - I), row-major.
    # pc_ref : (3, R, 128) VMEM — x / y / z coordinate planes of this tile.
    # out_ref: (8, 128) VMEM — sublane/lane-folded per-point distance sums for
    #          the current (b, jo) output block (resident across ji).
    b = pl.program_id(0)
    jo = pl.program_id(1)
    ji = pl.program_id(2)

    @pl.when(ji == 0)
    def _init():
        out_ref[...] = jnp.zeros_like(out_ref)

    # 12 scalars from SMEM drive a pure VPU affine (no MXU).  Row 3 of
    # (M - I) is identically zero and w == 1, so d3 == 0 and the translation
    # column is a plain scalar add.
    a = [a_ref[b, k] for k in range(12)]

    block_row0 = (jo * j_inner + ji) * rows_per_block
    n_chunks = rows_per_block // chunk_rows

    def chunk_body(c, acc):
        r0 = pl.multiple_of(c * chunk_rows, chunk_rows)
        x = pc_ref[0, pl.ds(r0, chunk_rows), :]
        y = pc_ref[1, pl.ds(r0, chunk_rows), :]
        z = pc_ref[2, pl.ds(r0, chunk_rows), :]
        d0 = a[0] * x + a[1] * y + a[2] * z + a[3]
        d1 = a[4] * x + a[5] * y + a[6] * z + a[7]
        d2 = a[8] * x + a[9] * y + a[10] * z + a[11]
        err = jnp.sqrt(d0 * d0 + d1 * d1 + d2 * d2)
        # NOTE: the reference calls `error.clamp(100.0)` WITHOUT assignment, so
        # it is deliberately a no-op here as well.  Do not "fix" it.
        if needs_mask:
            rows = lax.broadcasted_iota(jnp.int32, (chunk_rows, 128), 0)
            err = jnp.where(block_row0 + r0 + rows < total_rows, err, 0.0)
        # Sublane-split reshape is layout-free; fold the chunk into one vreg.
        return acc + err.reshape(chunk_rows // 8, 8, 128).sum(axis=0)

    acc = lax.fori_loop(0, n_chunks, chunk_body,
                        jnp.zeros((8, 128), jnp.float32), unroll=True)
    out_ref[...] = out_ref[...] + acc


# ------------------------------- wrapper --------------------------------------

def _round_up(x, m):
    return ((x + m - 1) // m) * m


def _pick_chunk_rows(rows_per_block):
    for c in (32, 16, 8):
        if rows_per_block % c == 0:
            return c
    return rows_per_block


def distance_points_3d(point_clouds, target_transl, target_rot,
                       transl_err, rot_err, *, points_per_tile=65536):
    """point_clouds: (B, 4, N) f32 homogeneous points (w == 1).  Returns (1,)."""
    point_clouds = point_clouds.astype(jnp.float32)
    B, four, N = point_clouds.shape
    assert four == 4
    assert N % 128 == 0, "N must be a multiple of 128 (lane-dense layout)"
    # TODO(synk): ragged / zero-padded clouds (the reference takes a Python
    # list of variable-length clouds) would need per-sample valid counts and
    # masks; here every one of the N points is assumed valid.

    # Small 4x4 pose algebra stays in plain JAX; ship rows 0..2 of (M - I)
    # (12 scalars per sample) via scalar prefetch into SMEM.
    M = jax.vmap(_build_inv_rt_total)(
        target_transl.astype(jnp.float32), target_rot.astype(jnp.float32),
        transl_err.astype(jnp.float32), rot_err.astype(jnp.float32))   # (B,4,4)
    A = (M - jnp.eye(4, dtype=jnp.float32))[:, :3, :].reshape(B, 12)

    total_rows = N // 128
    row_cap = max(8, (max(points_per_tile, 1024) // 128 // 8) * 8)
    R = min(_round_up(total_rows, 8), row_cap)
    n_row_tiles = pl.cdiv(total_rows, R)

    # Megacore (v7x: 2 TensorCores): make the parallel iteration count even
    # when the batch alone is odd, shrinking R if needed (mask handles the
    # remainder rows).  No effect on single-core v5e/v6e.
    j_outer = 1
    if B % 2 == 1:
        if n_row_tiles % 2 == 0:
            j_outer = 2
        elif total_rows > 8:
            r = R - 8
            while r >= 8 and pl.cdiv(total_rows, r) % 2 != 0:
                r -= 8
            if r >= 8:
                R = r
                n_row_tiles = pl.cdiv(total_rows, R)
                j_outer = 2
    j_inner = n_row_tiles // j_outer
    needs_mask = (n_row_tiles * R != total_rows)
    chunk_rows = _pick_chunk_rows(R)

    # Lane/sublane-dense coordinate planes: (B, 4, total_rows, 128).  The
    # BlockSpec below only covers planes 0..2, so the w plane never leaves HBM.
    pc4 = point_clouds.reshape(B, 4, total_rows, 128)

    pc_spec = pl.BlockSpec(
        (None, 3, R, 128),
        lambda b, jo, ji, a: (b, 0, jo * j_inner + ji, 0))
    out_spec = pl.BlockSpec(
        (None, None, 8, 128),
        lambda b, jo, ji, a: (b, jo, 0, 0))

    in_block_bytes = 3 * R * 128 * 4
    vmem_limit = int(min(64 * 2**20,
                         max(32 * 2**20, 4 * in_block_bytes + (2 << 20))))

    kernel = functools.partial(
        _points_dist_kernel, rows_per_block=R, chunk_rows=chunk_rows,
        j_inner=j_inner, total_rows=total_rows, needs_mask=needs_mask)

    sums = pl.pallas_call(
        kernel,
        out_shape=jax.ShapeDtypeStruct((B, j_outer, 8, 128), jnp.float32),
        grid_spec=pltpu.PrefetchScalarGridSpec(
            num_scalar_prefetch=1,
            grid=(B, j_outer, j_inner),
            in_specs=[pc_spec],
            out_specs=out_spec,
        ),
        compiler_params=pltpu.CompilerParams(
            dimension_semantics=("parallel", "parallel", "arbitrary"),
            vmem_limit_bytes=vmem_limit),
    )(A, pc4)

    per_sample_sum = jnp.sum(sums, axis=(1, 2, 3))      # (B,)
    per_sample_mean = per_sample_sum / N                # error.mean() per cloud
    total_loss = jnp.sum(per_sample_mean)               # batch loop sum
    return (total_loss / target_transl.shape[0]).reshape(1)


# ----------------------------- pure-JAX reference ------------------------------

def _reference(point_clouds, target_transl, target_rot, transl_err, rot_err):
    M = jax.vmap(_build_inv_rt_total)(target_transl, target_rot,
                                      transl_err, rot_err)
    pc_out = jnp.einsum('brk,bkn->brn', M, point_clouds)
    err = jnp.linalg.norm(pc_out - point_clouds, axis=1)     # (B, N)
    total = jnp.sum(jnp.mean(err, axis=1))
    return (total / target_transl.shape[0]).reshape(1)


def _make_inputs(key, B, N):
    k1, k2, k3, k4, k5 = jax.random.split(key, 5)
    xyz = jax.random.normal(k1, (B, 3, N), dtype=jnp.float32) * 5.0
    ones = jnp.ones((B, 1, N), dtype=jnp.float32)
    pc = jnp.concatenate([xyz, ones], axis=1)                  # (B, 4, N)
    tt = jax.random.normal(k2, (B, 3), dtype=jnp.float32) * 0.5
    tr = jax.random.normal(k3, (B, 4), dtype=jnp.float32)
    te = jax.random.normal(k4, (B, 3), dtype=jnp.float32) * 0.5
    re_ = jax.random.normal(k5, (B, 4), dtype=jnp.float32)
    return pc, tt, tr, te, re_


# ---------------------------------- main ---------------------------------------

if __name__ == "__main__":
    key = jax.random.PRNGKey(0)
    keys = jax.random.split(key, 5)

    cases = [
        # (B, N, points_per_tile)
        (2, 4096, 65536),   # single tile, 32-row strip-mined chunks
        (2, 4096, 1024),    # multi-tile accumulation along the inner axis
        (1, 2048, 1024),    # megacore point-axis split (j_outer = 2)
        (2, 1152, 1024),    # masked partial last tile (total_rows = 9)
        (3, 1920, 65536),   # odd batch: R shrink to even tile count + mask
    ]
    for k, (B, N, tile) in zip(keys, cases):
        pc, tt, tr, te, re_ = _make_inputs(k, B=B, N=N)
        fn = jax.jit(functools.partial(distance_points_3d, points_per_tile=tile))
        loss = jax.block_until_ready(fn(pc, tt, tr, te, re_))
        ref = _reference(pc, tt, tr, te, re_)
        assert loss.shape == (1,)
        assert jnp.allclose(loss, ref, rtol=1e-4, atol=1e-4), (B, N, tile, loss, ref)

    print("KERNEL_OK")
</pallas_src>

<mosaic_0001>
module attributes {stable_mosaic.version = 11 : i64} {
  func.func @_points_dist_kernel(%arg0: i32, %arg1: i32, %arg2: i32, %arg3: memref<2x12xf32, #tpu.memory_space<smem>>, %arg4: memref<1x3x32x128xf32, #tpu.memory_space<vmem>>, %arg5: memref<1x1x8x128xf32, #tpu.memory_space<vmem>>) attributes {dimension_semantics = [#tpu.dimension_semantics<parallel>, #tpu.dimension_semantics<parallel>, #tpu.dimension_semantics<arbitrary>], iteration_bounds = array<i64: 2, 1, 1>, scalar_prefetch = 1 : i64, scratch_operands = 0 : i64, tpu.core_type = #tpu.core_type<tc>, window_params = [{transform_indices = @transform_0, window_bounds = array<i64: 1, 3, 32, 128>}, {transform_indices = @transform_1, window_bounds = array<i64: 1, 1, 8, 128>}]} {
    %c0_i32 = arith.constant 0 : i32
    %0 = arith.cmpi eq, %arg2, %c0_i32 : i32
    %1 = arith.extui %0 : i1 to i32
    %c0_i32_0 = arith.constant 0 : i32
    %2 = arith.cmpi ne, %1, %c0_i32_0 : i32
    scf.if %2 {
      %cst_20 = arith.constant 0.000000e+00 : f32
      %84 = vector.broadcast %cst_20 : f32 to vector<8x128xf32>
      %c0_21 = arith.constant 0 : index
      %c0_22 = arith.constant 0 : index
      %c0_23 = arith.constant 0 : index
      %c0_24 = arith.constant 0 : index
      %85 = vector.load %arg5[%c0_21, %c0_22, %c0_23, %c0_24] : memref<1x1x8x128xf32, #tpu.memory_space<vmem>>, vector<1x1x8x128xf32>
      %86 = vector.shape_cast %85 : vector<1x1x8x128xf32> to vector<8x128xf32>
      %87 = vector.shape_cast %84 : vector<8x128xf32> to vector<1x1x8x128xf32>
      tpu.vector_store %arg5[%c0_21, %c0_22, %c0_23, %c0_24], %87 {strides = array<i32>} : memref<1x1x8x128xf32, #tpu.memory_space<vmem>>, vector<1x1x8x128xf32>,
    } else {
    }
    %3 = arith.index_cast %arg0 : i32 to index
    %c0 = arith.constant 0 : index
    %4 = memref.load %arg3[%3, %c0] : memref<2x12xf32, #tpu.memory_space<smem>>
    %5 = arith.index_cast %arg0 : i32 to index
    %c1 = arith.constant 1 : index
    %6 = memref.load %arg3[%5, %c1] : memref<2x12xf32, #tpu.memory_space<smem>>
    %7 = arith.index_cast %arg0 : i32 to index
    %c2 = arith.constant 2 : index
    %8 = memref.load %arg3[%7, %c2] : memref<2x12xf32, #tpu.memory_space<smem>>
    %9 = arith.index_cast %arg0 : i32 to index
    %c3 = arith.constant 3 : index
    %10 = memref.load %arg3[%9, %c3] : memref<2x12xf32, #tpu.memory_space<smem>>
    %11 = arith.index_cast %arg0 : i32 to index
    %c4 = arith.constant 4 : index
    %12 = memref.load %arg3[%11, %c4] : memref<2x12xf32, #tpu.memory_space<smem>>
    %13 = arith.index_cast %arg0 : i32 to index
    %c5 = arith.constant 5 : index
    %14 = memref.load %arg3[%13, %c5] : memref<2x12xf32, #tpu.memory_space<smem>>
    %15 = arith.index_cast %arg0 : i32 to index
    %c6 = arith.constant 6 : index
    %16 = memref.load %arg3[%15, %c6] : memref<2x12xf32, #tpu.memory_space<smem>>
    %17 = arith.index_cast %arg0 : i32 to index
    %c7 = arith.constant 7 : index
    %18 = memref.load %arg3[%17, %c7] : memref<2x12xf32, #tpu.memory_space<smem>>
    %19 = arith.index_cast %arg0 : i32 to index
    %c8 = arith.constant 8 : index
    %20 = memref.load %arg3[%19, %c8] : memref<2x12xf32, #tpu.memory_space<smem>>
    %21 = arith.index_cast %arg0 : i32 to index
    %c9 = arith.constant 9 : index
    %22 = memref.load %arg3[%21, %c9] : memref<2x12xf32, #tpu.memory_space<smem>>
    %23 = arith.index_cast %arg0 : i32 to index
    %c10 = arith.constant 10 : index
    %24 = memref.load %arg3[%23, %c10] : memref<2x12xf32, #tpu.memory_space<smem>>
    %25 = arith.index_cast %arg0 : i32 to index
    %c11 = arith.constant 11 : index
    %26 = memref.load %arg3[%25, %c11] : memref<2x12xf32, #tpu.memory_space<smem>>
    %cst = arith.constant 0.000000e+00 : f32
    %27 = vector.broadcast %cst : f32 to vector<8x128xf32>
    %c0_i32_1 = arith.constant 0 : i32
    %c32_i32 = arith.constant 32 : i32
    %28 = arith.muli %c0_i32_1, %c32_i32 : i32
    %29 = tpu.assume_multiple %28, 32 : i32
    %c0_2 = arith.constant 0 : index
    %c0_3 = arith.constant 0 : index
    %30 = arith.index_cast %29 : i32 to index
    %c0_4 = arith.constant 0 : index
    %31 = vector.load %arg4[%c0_2, %c0_3, %30, %c0_4] : memref<1x3x32x128xf32, #tpu.memory_space<vmem>>, vector<1x1x32x128xf32>
    %32 = vector.shape_cast %31 : vector<1x1x32x128xf32> to vector<32x128xf32>
    %c0_5 = arith.constant 0 : index
    %c1_6 = arith.constant 1 : index
    %33 = arith.index_cast %29 : i32 to index
    %c0_7 = arith.constant 0 : index
    %34 = vector.load %arg4[%c0_5, %c1_6, %33, %c0_7] : memref<1x3x32x128xf32, #tpu.memory_space<vmem>>, vector<1x1x32x128xf32>
    %35 = vector.shape_cast %34 : vector<1x1x32x128xf32> to vector<32x128xf32>
    %c0_8 = arith.constant 0 : index
    %c2_9 = arith.constant 2 : index
    %36 = arith.index_cast %29 : i32 to index
    %c0_10 = arith.constant 0 : index
    %37 = vector.load %arg4[%c0_8, %c2_9, %36, %c0_10] : memref<1x3x32x128xf32, #tpu.memory_space<vmem>>, vector<1x1x32x128xf32>
    %38 = vector.shape_cast %37 : vector<1x1x32x128xf32> to vector<32x128xf32>
    %39 = vector.broadcast %4 : f32 to vector<32x128xf32>
    %40 = arith.mulf %39, %32 : vector<32x128xf32>
    %41 = vector.broadcast %6 : f32 to vector<32x128xf32>
    %42 = arith.mulf %41, %35 : vector<32x128xf32>
    %43 = arith.addf %40, %42 : vector<32x128xf32>
    %44 = vector.broadcast %8 : f32 to vector<32x128xf32>
    %45 = arith.mulf %44, %38 : vector<32x128xf32>
    %46 = arith.addf %43, %45 : vector<32x128xf32>
    %47 = vector.broadcast %10 : f32 to vector<32x128xf32>
    %48 = arith.addf %46, %47 : vector<32x128xf32>
    %49 = vector.broadcast %12 : f32 to vector<32x128xf32>
    %50 = arith.mulf %49, %32 : vector<32x128xf32>
    %51 = vector.broadcast %14 : f32 to vector<32x128xf32>
    %52 = arith.mulf %51, %35 : vector<32x128xf32>
    %53 = arith.addf %50, %52 : vector<32x128xf32>
    %54 = vector.broadcast %16 : f32 to vector<32x128xf32>
    %55 = arith.mulf %54, %38 : vector<32x128xf32>
    %56 = arith.addf %53, %55 : vector<32x128xf32>
    %57 = vector.broadcast %18 : f32 to vector<32x128xf32>
    %58 = arith.addf %56, %57 : vector<32x128xf32>
    %59 = vector.broadcast %20 : f32 to vector<32x128xf32>
    %60 = arith.mulf %59, %32 : vector<32x128xf32>
    %61 = vector.broadcast %22 : f32 to vector<32x128xf32>
    %62 = arith.mulf %61, %35 : vector<32x128xf32>
    %63 = arith.addf %60, %62 : vector<32x128xf32>
    %64 = vector.broadcast %24 : f32 to vector<32x128xf32>
    %65 = arith.mulf %64, %38 : vector<32x128xf32>
    %66 = arith.addf %63, %65 : vector<32x128xf32>
    %67 = vector.broadcast %26 : f32 to vector<32x128xf32>
    %68 = arith.addf %66, %67 : vector<32x128xf32>
    %69 = arith.mulf %48, %48 : vector<32x128xf32>
    %70 = arith.mulf %58, %58 : vector<32x128xf32>
    %71 = arith.addf %69, %70 : vector<32x128xf32>
    %72 = arith.mulf %68, %68 : vector<32x128xf32>
    %73 = arith.addf %71, %72 : vector<32x128xf32>
    %74 = math.sqrt %73 : vector<32x128xf32>
    %75 = vector.shape_cast %74 : vector<32x128xf32> to vector<4x8x128xf32>
    %cst_11 = arith.constant dense<0.000000e+00> : vector<8x128xf32>
    %76 = vector.multi_reduction <add>, %75, %cst_11 [0] : vector<4x8x128xf32> to vector<8x128xf32>
    %77 = arith.addf %27, %76 : vector<8x128xf32>
    %c1_i32 = arith.constant 1 : i32
    %c0_12 = arith.constant 0 : index
    %c0_13 = arith.constant 0 : index
    %c0_14 = arith.constant 0 : index
    %c0_15 = arith.constant 0 : index
    %78 = vector.load %arg5[%c0_12, %c0_13, %c0_14, %c0_15] : memref<1x1x8x128xf32, #tpu.memory_space<vmem>>, vector<1x1x8x128xf32>
    %79 = vector.shape_cast %78 : vector<1x1x8x128xf32> to vector<8x128xf32>
    %80 = arith.addf %79, %77 : vector<8x128xf32>
    %c0_16 = arith.constant 0 : index
    %c0_17 = arith.constant 0 : index
    %c0_18 = arith.constant 0 : index
    %c0_19 = arith.constant 0 : index
    %81 = vector.load %arg5[%c0_16, %c0_17, %c0_18, %c0_19] : memref<1x1x8x128xf32, #tpu.memory_space<vmem>>, vector<1x1x8x128xf32>
    %82 = vector.shape_cast %81 : vector<1x1x8x128xf32> to vector<8x128xf32>
    %83 = vector.shape_cast %80 : vector<8x128xf32> to vector<1x1x8x128xf32>
    tpu.vector_store %arg5[%c0_16, %c0_17, %c0_18, %c0_19], %83 {strides = array<i32>} : memref<1x1x8x128xf32, #tpu.memory_space<vmem>>, vector<1x1x8x128xf32>,
    return
  }
  func.func @transform_0(%arg0: i32, %arg1: i32, %arg2: i32, %arg3: memref<2x12xf32, #tpu.memory_space<smem>>) -> (i32, i32, i32, i32) {
    %c1_i32 = arith.constant 1 : i32
    %0 = arith.muli %arg1, %c1_i32 : i32
    %1 = arith.addi %0, %arg2 : i32
    %c0_i32 = arith.constant 0 : i32
    %c0_i32_0 = arith.constant 0 : i32
    %c0_i32_1 = arith.constant 0 : i32
    return %arg0, %c0_i32, %1, %c0_i32_0 : i32, i32, i32, i32
  }
  func.func @transform_1(%arg0: i32, %arg1: i32, %arg2: i32, %arg3: memref<2x12xf32, #tpu.memory_space<smem>>) -> (i32, i32, i32, i32) {
    %c0_i32 = arith.constant 0 : i32
    %c0_i32_0 = arith.constant 0 : i32
    %c0_i32_1 = arith.constant 0 : i32
    return %arg0, %arg1, %c0_i32, %c0_i32_0 : i32, i32, i32, i32
  }
}

</mosaic_0001>

<llo_original>
// kernel: custom-call.22
$region0: #{custom-call.22}
  %s0 = inlined_call_operand.vmem [shape: f32[2,4,4], index: 0, kind: input, shape index: {}]
  %s1 = inlined_call_operand.vmem [shape: f32[2,4,4], index: 1, kind: output, shape index: {0}]
  %s2 = inlined_call_operand.hbm [shape: s32[2,4], index: 2, kind: output, shape index: {1}]
  %s3 = inlined_call_operand.vmem [shape: s32[2,4], index: 3, kind: output, shape index: {2}]
  %4 = xla_tuple %s1, %s2, %s3
  $region1: #{custom-call.22} parent=0
    #allocation0 [shape = 'u8[4096]{0}', space=vmem, size = 0x1000, scoped, tag = 'operand span for operand 0']
    #allocation1 [shape = 'u8[4096]{0}', space=vmem, size = 0x1000, scoped, tag = 'packed  for operand 0']
    #allocation2 [shape = 'u8[4096]{0}', space=vmem, size = 0x1000, scoped, tag = 'operand span for operand 1']
    #allocation3 [shape = 'u8[4096]{0}', space=vmem, size = 0x1000, scoped, tag = 'packed  for operand 1']
    #allocation4 [shape = 'u8[4096]{0}', space=vmem, size = 0x1000, scoped, tag = 'operand span for operand 2']
    #allocation5 [shape = 'u8[2048]{0}', space=vmem, size = 0x800, scoped, tag = 'packed  for operand 2']
    #allocation6 [shape = 's32[2]{0}', space=sflag, size = 0x8, scoped, tag = 'scoped memory for custom-call.22']
    #allocation7 [shape = 'u8[4096]{0}', space=vmem, size = 0x1000, scoped, tag = 'operand span for operand 3']
    #allocation8 [shape = 'u8[2048]{0}', space=vmem, size = 0x800, scoped, tag = 'packed  for operand 3']
    %5 = vsyncpa [#allocation6], 0
    %s6 = scalar_lea.sflag [#allocation6], 1
    %7 = vsyncpa %s6, 0
    loop: start=0, step=1, limit=4
    $region2: #{custom-call.22} parent=1 // loop_pre_header
      _
    $region3: #{custom-call.22} parent=1 // loop_header
      %s9 = sphi 0, %s13
      %p10 = scmp.ge.s32.totalorder %s9, 4
      %s21 = sphi 0, %s23
      %s24 = sphi 0, %s21
      %s25 = sphi 0, %s24
      %s41 = sphi 0, %s25
      %s49 = sphi 0, %s51
      %s52 = sphi 0, %s49
      %s53 = sphi 0, %s52
      %s69 = sphi 0, %s53
    $region4: #{custom-call.22} parent=1 // loop_header_branch
      %12 = sbr.rel (%p10) target = $region8
    $region5: #{custom-call.22} parent=1 // loop_body
      %s14 = ssub.s32 %s9, 1
      %s15 = ssub.s32 %s9, 2
      %s16 = sadd.s32 %s9, 1
      %s17 = sshrl.u32 %s9, 3
      %s18 = sshrl.u32 %s16, 3
      %s19 = ssub.s32 %s17, %s18
      %p20 = scmp.eq.s32.totalorder %s19, 0
      %s22 = sadd.s32 %s21, 1
      %s23 = scalar_select %p20, %s21, %s22
      %p26 = pneg %p20
      %p27 = scmp.eq.s32.totalorder %s9, 1
      %p28 = por %p26, %p27
      %p29 = scmp.ne.s32.totalorder %s21, %s24
      %p30 = scmp.eq.s32.totalorder %s9, 0
      %p31 = por %p29, %p30
      %p32 = scmp.ne.s32.totalorder %s21, %s24
      %p33 = scmp.eq.s32.totalorder %s14, 1
      %p34 = por %p32, %p33
      %p35 = scmp.ne.s32.totalorder %s24, %s25
      %p36 = scmp.eq.s32.totalorder %s14, 0
      %p37 = por %p35, %p36
      %p38 = scmp.ne.s32.totalorder %s24, %s25
      %p39 = scmp.eq.s32.totalorder %s15, 1
      %p40 = por %p38, %p39
      %p42 = scmp.ne.s32.totalorder %s25, %s41
      %p43 = scmp.eq.s32.totalorder %s15, 0
      %p44 = por %p42, %p43
      %s45 = sshrl.u32 %s9, 3
      %s46 = sshrl.u32 %s16, 3
      %s47 = ssub.s32 %s45, %s46
      %p48 = scmp.eq.s32.totalorder %s47, 0
      %s50 = sadd.s32 %s49, 1
      %s51 = scalar_select %p48, %s49, %s50
      %p54 = pneg %p48
      %p55 = scmp.eq.s32.totalorder %s9, 1
      %p56 = por %p54, %p55
      %p57 = scmp.ne.s32.totalorder %s49, %s52
      %p58 = scmp.eq.s32.totalorder %s9, 0
      %p59 = por %p57, %p58
      %p60 = scmp.ne.s32.totalorder %s49, %s52
      %p61 = scmp.eq.s32.totalorder %s14, 1
      %p62 = por %p60, %p61
      %p63 = scmp.ne.s32.totalorder %s52, %s53
      %p64 = scmp.eq.s32.totalorder %s14, 0
      %p65 = por %p63, %p64
      %p66 = scmp.ne.s32.totalorder %s52, %s53
      %p67 = scmp.eq.s32.totalorder %s15, 1
      %p68 = por %p66, %p67
      %p70 = scmp.ne.s32.totalorder %s53, %s69
      %p71 = scmp.eq.s32.totalorder %s15, 0
      %p72 = por %p70, %p71
      %p73 = scmp.le.s32.totalorder 1, %s9
      %p74 = scmp.lt.s32.totalorder %s9, 3
      %p75 = pnand %p73, %p74
      %p76 = pneg %p75
      // Predicated region
      $region9: #{custom-call.22} parent=5 // pred_check
        _
      $region10: #{custom-call.22} parent=5 // pred_check_branch
        %78 = sbr.rel (%p75) target = $region12
      $region11: #{custom-call.22} parent=5 // pred_region
        %s79 = ssub.s32 %s9, 1
      $region12: #{custom-call.22} parent=5 // pred_fallthru
        _
      %p80 = scmp.lt.s32.totalorder %s9, 2
      // Predicated region
      $region13: #{custom-call.22} parent=5 // pred_check
        %p81 = pneg %p80
      $region14: #{custom-call.22} parent=5 // pred_check_branch
        %83 = sbr.rel (%p81) target = $region16
      $region15: #{custom-call.22} parent=5 // pred_region
        %s84 = sand.u32 %s9, 1
        %s85 = sand.u32 %s9, 1
        %s86 = smul.addr %s85, 4
        %s87 = scalar_lea.vmem [#allocation1], %s86
        %s88 = smul.addr %s9, 4
        %s89 = scalar_lea.vmem %s0, %s88
        // Predicated region
        $region17: #{custom-call.22} parent=15 // pred_check
          _
        $region18: #{custom-call.22} parent=15 // pred_check_branch
          %91 = sbr.rel (0) target = $region20
        $region19: #{custom-call.22} parent=15 // pred_region
          // Predicated region
          $region21: #{custom-call.22} parent=19 // pred_check
            _
          $region22: #{custom-call.22} parent=19 // pred_check_branch
            %93 = sbr.rel target = $region24
          $region23: #{custom-call.22} parent=19 // pred_region
            // Predicated region
            $region36: #{custom-call.22} parent=23 // pred_check
              _
            $region37: #{custom-call.22} parent=23 // pred_check_branch
              %109 = sbr.rel (0) target = $region39
            $region38: #{custom-call.22} parent=23 // pred_region
              %s111 = ssub.s32 16, 1
              loop: start=0, step=1, limit=1
              $region40: #{custom-call.22} parent=38 // loop_pre_header
                _
              $region41: #{custom-call.22} parent=38 // loop_header
                %s113 = sphi 0, %s117
                %p114 = scmp.ge.s32.totalorder %s113, 1
                %s118 = sphi %s89, %s89
                %s119 = sphi %s87, %s87
              $region42: #{custom-call.22} parent=38 // loop_header_branch
                %116 = sbr.rel (%p114) target = $region46
              $region43: #{custom-call.22} parent=38 // loop_body
                %v120 = vld [vmem:[%s118] sm:%s111]
                %121 = vst [vmem:[%s119] sm:%s111] %v120
              $region44: #{custom-call.22} parent=38 // loop_footer
                %s117 = sadd.s32 1, %s113
              $region45: #{custom-call.22} parent=38 // loop_footer_branch
                %112 = sbr.rel target = $region41
              $region46: #{custom-call.22} parent=38 // loop_exit
                _
            $region39: #{custom-call.22} parent=23 // pred_fallthru
              _
          $region24: #{custom-call.22} parent=19 // pred_fallthru
            _
          // Predicated region
          $region25: #{custom-call.22} parent=19 // pred_check
            _
          $region26: #{custom-call.22} parent=19 // pred_check_branch
            %95 = sbr.rel (0) target = $region28
          $region27: #{custom-call.22} parent=19 // pred_region
            %s97 = ssub.s32 16, 1
            loop: start=0, step=1, limit=1
            $region29: #{custom-call.22} parent=27 // loop_pre_header
              _
            $region30: #{custom-call.22} parent=27 // loop_header
              %s99 = sphi 0, %s103
              %p100 = scmp.ge.s32.totalorder %s99, 1
              %s104 = sphi %s89, %s89
              %s105 = sphi %s87, %s87
            $region31: #{custom-call.22} parent=27 // loop_header_branch
              %102 = sbr.rel (%p100) target = $region35
            $region32: #{custom-call.22} parent=27 // loop_body
              %v106 = vld [vmem:[%s104] sm:%s97]
              %107 = vst [vmem:[%s105] sm:%s97] %v106
            $region33: #{custom-call.22} parent=27 // loop_footer
              %s103 = sadd.s32 1, %s99
            $region34: #{custom-call.22} parent=27 // loop_footer_branch
              %98 = sbr.rel target = $region30
            $region35: #{custom-call.22} parent=27 // loop_exit
              _
          $region28: #{custom-call.22} parent=19 // pred_fallthru
            _
        $region20: #{custom-call.22} parent=15 // pred_fallthru
          _
        %122 = vnop
      $region16: #{custom-call.22} parent=5 // pred_fallthru
        _
      %p123 = scmp.le.s32.totalorder 1, %s9
      %p124 = scmp.lt.s32.totalorder %s9, 3
      %p125 = pnand %p123, %p124
      %p126 = pneg %p125
      // Predicated region
      $region47: #{custom-call.22} parent=5 // pred_check
        _
      $region48: #{custom-call.22} parent=5 // pred_check_branch
        %128 = sbr.rel (%p125) target = $region50
      $region49: #{custom-call.22} parent=5 // pred_region
        #allocation9 [shape = 's32[4,128]{1,0}', space=vmem, size = 0x1000, scoped, tag = 'scratch for permutations']
        %s129 = ssub.s32 %s9, 1
        %s130 = sand.u32 %s14, 1
        %s131 = sand.u32 %s14, 1
        %s132 = smul.addr %s131, 4
        %s133 = scalar_lea.vmem [#allocation1], %s132
        %s134 = sand.u32 %s14, 1
        %s135 = sand.u32 %s14, 1
        %s136 = smul.addr %s135, 4
        %s137 = scalar_lea.vmem [#allocation1], %s136
        %s138 = sand.u32 %s14, 1
        %s139 = sand.u32 %s14, 1
        %s140 = smul.addr %s139, 4
        %s141 = scalar_lea.vmem [#allocation3], %s140
        %p142 = pneg %p37
        %p143 = pneg %p34
        %s144 = sand.u32 %s24, 1
        %s145 = scalar_lea.sflag [#allocation6], %s144
        %s146 = sand.u32 %s24, 1
        %s147 = smul.addr %s146, 2
        %s148 = scalar_lea.vmem [#allocation5], %s147
        %p149 = pneg %p65
        %p150 = pneg %p62
        %s151 = sand.u32 %s52, 1
        %s152 = sand.u32 %s52, 1
        %s153 = smul.addr %s152, 2
        %s154 = scalar_lea.vmem [#allocation8], %s153
        %s156 = sshll.u32 1, 4
        %s157 = ssub.s32 %s156, 1
        %v158 = vld [vmem:[%s137] sm:%s157]
        %159 = vst [vmem:[#allocation0] sm:%s157] %v158
        %s160 = sshrl.u32 %s14, 3
        %s161 = sshrl.u32 %s14, 3
        %v162 = vld [vmem:[#allocation0] sm:$0xff]
        %163 = vst [vmem:[#allocation2] sm:$0xff] %v162
        %s164 = sand.u32 %s14, 7
        %s165 = scalar_lea.vmem [#allocation4], %s164
        %s166 = sand.u32 %s14, 7
        %s167 = scalar_lea.vmem [#allocation7], %s166
        %168 = vst [vmem:[%s165] sm:$0x1] 0
        %v169 = vlaneseq
        %v170 = vshrl.u32 %v169, 7
        %v171 = vmov %v170
        %173 = vst [vmem:[#allocation9] sm:$0xff] %v171
        loop: start=0, step=1, limit=4
        $region52: #{custom-call.22} parent=49 // loop_pre_header
          _
        $region53: #{custom-call.22} parent=49 // loop_header
          %s175 = sphi 0, %s179
          %p176 = scmp.ge.s32.totalorder %s175, 4
        $region54: #{custom-call.22} parent=49 // loop_header_branch
          %178 = sbr.rel (%p176) target = $region58
        $region55: #{custom-call.22} parent=49 // loop_body
          %v180 = vstv %s175
          %v181 = vlaneseq
          %v182 = vshrl.u32 %v181, 7
          %v183 = vmov %v182
          %v184 = vld [vmem:[#allocation2] sm:$0xff]
          %v185 = vand.u32 2147483647, %v184
          %v187 = vstv %s175
          %vm188 = vcmp.ge.s32.totalorder %v183, %v187
          %vm189 = vcmp.lt.s32.totalorder %v183, 4
          %vm190 = vmand %vm188, %vm189
          %vm191 = vcmp.lt.f32.partialorder -inf, %v185
          %vm192 = vmand %vm190, %vm191
          %v193 = vsel %vm192, %v183, %v180
          %v194 = vsel %vm192, %v185, -inf
          %v195 = vrot.slane %v194, 1
          %v196 = vrot.slane %v193, 1
          %vm197 = vcmp.ge.f32.partialorder %v195, %v194
          %v198 = vsel %vm197, %v195, %v194
          %v199 = vsel %vm197, %v196, %v193
          %v200 = vrot.slane %v195, 1
          %v201 = vrot.slane %v196, 1
          %vm202 = vcmp.ge.f32.partialorder %v200, %v198
          %v203 = vsel %vm202, %v200, %v198
          %v204 = vsel %vm202, %v201, %v199
          %v205 = vrot.slane %v200, 1
          %v206 = vrot.slane %v201, 1
          %vm207 = vcmp.ge.f32.partialorder %v205, %v203
          %v208 = vsel %vm207, %v205, %v203
          %v209 = vsel %vm207, %v206, %v204
          %v210 = vrot.slane %v205, 1
          %v211 = vrot.slane %v206, 1
          %vm212 = vcmp.ge.f32.partialorder %v210, %v208
          %v213 = vsel %vm212, %v210, %v208
          %v214 = vsel %vm212, %v211, %v209
          %v215 = vrot.slane %v210, 1
          %v216 = vrot.slane %v211, 1
          %vm217 = vcmp.ge.f32.partialorder %v215, %v213
          %v218 = vsel %vm217, %v215, %v213
          %v219 = vsel %vm217, %v216, %v214
          %v220 = vrot.slane %v215, 1
          %v221 = vrot.slane %v216, 1
          %vm222 = vcmp.ge.f32.partialorder %v220, %v218
          %v223 = vsel %vm222, %v220, %v218
          %v224 = vsel %vm222, %v221, %v219
          %v225 = vrot.slane %v220, 1
          %v226 = vrot.slane %v221, 1
          %vm227 = vcmp.ge.f32.partialorder %v225, %v223
          %v228 = vsel %vm227, %v225, %v223
          %v229 = vsel %vm227, %v226, %v224
          %s230 = ssub.s32 128, %s175
          %231 = vrot.lane.b32.xlu0 %v229, %s230
          %v232 = vpop.permute.xlu0 %231
          %s233 = vtos %v232
          %v234 = vstv %s175
          %v235 = vlaneseq
          %v236 = vand.u32 %v235, 127
          %vm237 = vcmp.eq.s32.totalorder %v236, %v234
          %v238 = vstv %s233
          %v239 = vld [vmem:[%s165] ss:$0 sm:$0xff]
          %v240 = vsel %vm237, %v238, %v239
          %241 = vst [vmem:[%s165] sm:$0x1] %v240
          %s242 = scalar_lea.vmem [#allocation2], %s175
          %s243 = scalar_lea.vmem [#allocation2], %s233
          %v244 = vld [vmem:[%s242] ss:$0 sm:$0xff]
          %v245 = vld [vmem:[%s243] ss:$0 sm:$0xff]
          %246 = vst [vmem:[%s243] sm:$0x1] %v244
          %247 = vst [vmem:[%s242] sm:$0x1] %v245
          %s248 = scalar_lea.vmem [#allocation9], %s175
          %s249 = scalar_lea.vmem [#allocation9], %s233
          %v250 = vld [vmem:[%s248] ss:$0 sm:$0xff]
          %v251 = vld [vmem:[%s249] ss:$0 sm:$0xff]
          %252 = vst [vmem:[%s249] sm:$0x1] %v250
          %253 = vst [vmem:[%s248] sm:$0x1] %v251
          %vm254 = vcmp.ne.f32.partialorder %v245, 0.0
          %vm255 = vmand %vm237, %vm254
          %v256 = vsel %vm255, %v245, 1.0
          %v257 = vlaneseq
          %v258 = vand.u32 %v257, 127
          %v259 = vstv %s175
          %vm260 = vcmp.gt.s32.totalorder %v258, %v259
          %v261 = vsel %vm260, %v245, 0.0
          %v262 = vlaneseq
          %v263 = vshrl.u32 %v262, 7
          %v264 = vmov %v263
          %v265 = vld [vmem:[#allocation2] sm:$0xff]
          %v267 = vstv %s175
          %vm268 = vcmp.gt.s32.totalorder %v264, %v267
          %v269 = vsel %vm268, %v256, 1.0
          %v270 = vrcp.pop %v269
          %v271 = vmul.f32 %v265, %v270
          %vm272 = vmand %vm268, %vm237
          %v273 = vsel %vm272, %v271, 0.0
          %274 = vadd.xlane.f32.xlu0 %v273
          %v275 = vpop.xlane.xlu0 %274
          %v276 = vmul.f32 %v275, %v261
          %v277 = vsub.f32 %v271, %v276
          %278 = vst [vmem:[#allocation2] sm:$0xff] %v277
        $region56: #{custom-call.22} parent=49 // loop_footer
          %s179 = sadd.s32 1, %s175
        $region57: #{custom-call.22} parent=49 // loop_footer_branch
          %174 = sbr.rel target = $region53
        $region58: #{custom-call.22} parent=49 // loop_exit
          _
        %v279 = vld [vmem:[#allocation9] sm:$0xff]
        %s280 = scalar_lea.vmem [#allocation9], 8
        %s281 = scalar_lea.vmem [#allocation9], 16
        %s282 = scalar_lea.vmem [#allocation9], 24
        %s283 = scalar_lea.vmem [#allocation9], 32
        %s284 = scalar_lea.vmem [#allocation9], 40
        %s285 = scalar_lea.vmem [#allocation9], 48
        %s286 = scalar_lea.vmem [#allocation9], 56
        %s287 = scalar_lea.vmem [#allocation9], 64
        %s288 = scalar_lea.vmem [#allocation9], 72
        %s289 = scalar_lea.vmem [#allocation9], 80
        %s290 = scalar_lea.vmem [#allocation9], 88
        %s291 = scalar_lea.vmem [#allocation9], 96
        %s292 = scalar_lea.vmem [#allocation9], 104
        %s293 = scalar_lea.vmem [#allocation9], 112
        %s294 = scalar_lea.vmem [#allocation9], 120
        %295 = vxpose.xlu0.b32.start [1/16] %v279, 128
        %296 = vxpose.xlu0.b32.cont [2/16] 0, 128
        %297 = vxpose.xlu0.b32.cont [3/16] 0, 128
        %298 = vxpose.xlu0.b32.cont [4/16] 0, 128
        %299 = vxpose.xlu0.b32.cont [5/16] 0, 128
        %300 = vxpose.xlu0.b32.cont [6/16] 0, 128
        %301 = vxpose.xlu0.b32.cont [7/16] 0, 128
        %302 = vxpose.xlu0.b32.cont [8/16] 0, 128
        %303 = vxpose.xlu0.b32.cont [9/16] 0, 128
        %304 = vxpose.xlu0.b32.cont [10/16] 0, 128
        %305 = vxpose.xlu0.b32.cont [11/16] 0, 128
        %306 = vxpose.xlu0.b32.cont [12/16] 0, 128
        %307 = vxpose.xlu0.b32.cont [13/16] 0, 128
        %308 = vxpose.xlu0.b32.cont [14/16] 0, 128
        %309 = vxpose.xlu0.b32.cont [15/16] 0, 128
        %310 = vxpose.xlu0.b32.end [16/16] 0, 128
        %v311 = vpop.trf.xlu0
        %v312 = vpop.trf.xlu0
        %v313 = vpop.trf.xlu0
        %v314 = vpop.trf.xlu0
        %v315 = vpop.trf.xlu0
        %v316 = vpop.trf.xlu0
        %v317 = vpop.trf.xlu0
        %v318 = vpop.trf.xlu0
        %v319 = vpop.trf.xlu0
        %v320 = vpop.trf.xlu0
        %v321 = vpop.trf.xlu0
        %v322 = vpop.trf.xlu0
        %v323 = vpop.trf.xlu0
        %v324 = vpop.trf.xlu0
        %v325 = vpop.trf.xlu0
        %v326 = vpop.trf.xlu0
        %327 = vst [vmem:[%s167] sm:$0x1] %v311
        %s329 = sshll.u32 1, 4
        %s330 = ssub.s32 %s329, 1
        %v332 = vld [vmem:[#allocation2] sm:%s330]
        %s333 = sshll.u32 1, 4
        %s334 = ssub.s32 %s333, 1
        %335 = vst [vmem:[%s141] sm:%s334] %v332
        %s337 = sshll.u32 1, 2
        %s338 = ssub.s32 %s337, 1
        %v340 = vld [vmem:[#allocation4] sm:%s338]
        %s341 = sshll.u32 1, 2
        %s342 = ssub.s32 %s341, 1
        %343 = vst [vmem:[%s148] sm:%s342] %v340
        %s345 = sshll.u32 1, 2
        %s346 = ssub.s32 %s345, 1
        %v348 = vld [vmem:[#allocation7] sm:%s346]
        %s349 = sshll.u32 1, 2
        %s350 = ssub.s32 %s349, 1
        %351 = vst [vmem:[%s154] sm:%s350] %v348
        %s352 = sand.u32 %s14, 1
        %s353 = sand.u32 %s14, 1
        %s354 = smul.addr %s353, 4
        %s355 = scalar_lea.vmem [#allocation3], %s354
        %s356 = sand.u32 %s24, 1
        %s357 = scalar_lea.sflag [#allocation6], %s356
        %s358 = sand.u32 %s24, 1
        %s359 = smul.addr %s358, 2
        %s360 = scalar_lea.vmem [#allocation5], %s359
        %s361 = sand.u32 %s52, 1
        %s362 = sand.u32 %s52, 1
        %s363 = smul.addr %s362, 2
        %s364 = scalar_lea.vmem [#allocation8], %s363
        %s365 = smul.addr %s14, 4
        %s366 = scalar_lea.vmem %s1, %s365
        // Predicated region
        $region59: #{custom-call.22} parent=49 // pred_check
          _
        $region60: #{custom-call.22} parent=49 // pred_check_branch
          %368 = sbr.rel (0) target = $region62
        $region61: #{custom-call.22} parent=49 // pred_region
          // Predicated region
          $region63: #{custom-call.22} parent=61 // pred_check
            _
          $region64: #{custom-call.22} parent=61 // pred_check_branch
            %370 = sbr.rel target = $region66
          $region65: #{custom-call.22} parent=61 // pred_region
            // Predicated region
            $region78: #{custom-call.22} parent=65 // pred_check
              _
            $region79: #{custom-call.22} parent=65 // pred_check_branch
              %386 = sbr.rel (0) target = $region81
            $region80: #{custom-call.22} parent=65 // pred_region
              %s388 = ssub.s32 16, 1
              loop: start=0, step=1, limit=1
              $region82: #{custom-call.22} parent=80 // loop_pre_header
                _
              $region83: #{custom-call.22} parent=80 // loop_header
                %s390 = sphi 0, %s394
                %p391 = scmp.ge.s32.totalorder %s390, 1
                %s395 = sphi %s355, %s355
                %s396 = sphi %s366, %s366
              $region84: #{custom-call.22} parent=80 // loop_header_branch
                %393 = sbr.rel (%p391) target = $region88
              $region85: #{custom-call.22} parent=80 // loop_body
                %v397 = vld [vmem:[%s395] sm:%s388]
                %398 = vst [vmem:[%s396] sm:%s388] %v397
              $region86: #{custom-call.22} parent=80 // loop_footer
                %s394 = sadd.s32 1, %s390
              $region87: #{custom-call.22} parent=80 // loop_footer_branch
                %389 = sbr.rel target = $region83
              $region88: #{custom-call.22} parent=80 // loop_exit
                _
            $region81: #{custom-call.22} parent=65 // pred_fallthru
              _
          $region66: #{custom-call.22} parent=61 // pred_fallthru
            _
          // Predicated region
          $region67: #{custom-call.22} parent=61 // pred_check
            _
          $region68: #{custom-call.22} parent=61 // pred_check_branch
            %372 = sbr.rel (0) target = $region70
          $region69: #{custom-call.22} parent=61 // pred_region
            %s374 = ssub.s32 16, 1
            loop: start=0, step=1, limit=1
            $region71: #{custom-call.22} parent=69 // loop_pre_header
              _
            $region72: #{custom-call.22} parent=69 // loop_header
              %s376 = sphi 0, %s380
              %p377 = scmp.ge.s32.totalorder %s376, 1
              %s381 = sphi %s355, %s355
              %s382 = sphi %s366, %s366
            $region73: #{custom-call.22} parent=69 // loop_header_branch
              %379 = sbr.rel (%p377) target = $region77
            $region74: #{custom-call.22} parent=69 // loop_body
              %v383 = vld [vmem:[%s381] sm:%s374]
              %384 = vst [vmem:[%s382] sm:%s374] %v383
            $region75: #{custom-call.22} parent=69 // loop_footer
              %s380 = sadd.s32 1, %s376
            $region76: #{custom-call.22} parent=69 // loop_footer_branch
              %375 = sbr.rel target = $region72
            $region77: #{custom-call.22} parent=69 // loop_exit
              _
          $region70: #{custom-call.22} parent=61 // pred_fallthru
            _
        $region62: #{custom-call.22} parent=49 // pred_fallthru
          _
        %399 = vnop
        // Predicated region
        $region89: #{custom-call.22} parent=49 // pred_check
          %p400 = pneg %p34
        $region90: #{custom-call.22} parent=49 // pred_check_branch
          %402 = sbr.rel (%p400) target = $region92
        $region91: #{custom-call.22} parent=49 // pred_region
          %s403 = sshrl.u32 %s14, 3
          %s405 = ssub.s32 32, 32
          %406 = vsyncadd %s357, %s405
          %s407 = smul.addr %s403, 32
          %s408 = scalar_lea.hbm %s2, %s407
          %s410 = sshll.u32 %s360, 4
          %s411 = int_to_ptr.vmem [resolvable:$true] %s410
          %413 = dma.vmem_to_hbm [thread:$0]  %s411, 32, %s408, %s357
        $region92: #{custom-call.22} parent=49 // pred_fallthru
          _
        // Predicated region
        $region93: #{custom-call.22} parent=49 // pred_check
          %p414 = pneg %p62
        $region94: #{custom-call.22} parent=49 // pred_check_branch
          %416 = sbr.rel (%p414) target = $region96
        $region95: #{custom-call.22} parent=49 // pred_region
          %s417 = sshrl.u32 %s14, 3
          %s418 = smul.addr %s417, 2
          %s419 = scalar_lea.vmem %s3, %s418
          // Predicated region
          $region97: #{custom-call.22} parent=95 // pred_check
            _
          $region98: #{custom-call.22} parent=95 // pred_check_branch
            %421 = sbr.rel (0) target = $region100
          $region99: #{custom-call.22} parent=95 // pred_region
            // Predicated region
            $region101: #{custom-call.22} parent=99 // pred_check
              _
            $region102: #{custom-call.22} parent=99 // pred_check_branch
              %423 = sbr.rel target = $region104
            $region103: #{custom-call.22} parent=99 // pred_region
              // Predicated region
              $region116: #{custom-call.22} parent=103 // pred_check
                _
              $region117: #{custom-call.22} parent=103 // pred_check_branch
                %439 = sbr.rel (0) target = $region119
              $region118: #{custom-call.22} parent=103 // pred_region
                %s441 = ssub.s32 4, 1
                loop: start=0, step=1, limit=1
                $region120: #{custom-call.22} parent=118 // loop_pre_header
                  _
                $region121: #{custom-call.22} parent=118 // loop_header
                  %s443 = sphi 0, %s447
                  %p444 = scmp.ge.s32.totalorder %s443, 1
                  %s448 = sphi %s364, %s364
                  %s449 = sphi %s419, %s419
                $region122: #{custom-call.22} parent=118 // loop_header_branch
                  %446 = sbr.rel (%p444) target = $region126
                $region123: #{custom-call.22} parent=118 // loop_body
                  %v450 = vld [vmem:[%s448] sm:%s441]
                  %451 = vst [vmem:[%s449] sm:%s441] %v450
                $region124: #{custom-call.22} parent=118 // loop_footer
                  %s447 = sadd.s32 1, %s443
                $region125: #{custom-call.22} parent=118 // loop_footer_branch
                  %442 = sbr.rel target = $region121
                $region126: #{custom-call.22} parent=118 // loop_exit
                  _
              $region119: #{custom-call.22} parent=103 // pred_fallthru
                _
            $region104: #{custom-call.22} parent=99 // pred_fallthru
              _
            // Predicated region
            $region105: #{custom-call.22} parent=99 // pred_check
              _
            $region106: #{custom-call.22} parent=99 // pred_check_branch
              %425 = sbr.rel (0) target = $region108
            $region107: #{custom-call.22} parent=99 // pred_region
              %s427 = ssub.s32 4, 1
              loop: start=0, step=1, limit=1
              $region109: #{custom-call.22} parent=107 // loop_pre_header
                _
              $region110: #{custom-call.22} parent=107 // loop_header
                %s429 = sphi 0, %s433
                %p430 = scmp.ge.s32.totalorder %s429, 1
                %s434 = sphi %s364, %s364
                %s435 = sphi %s419, %s419
              $region111: #{custom-call.22} parent=107 // loop_header_branch
                %432 = sbr.rel (%p430) target = $region115
              $region112: #{custom-call.22} parent=107 // loop_body
                %v436 = vld [vmem:[%s434] sm:%s427]
                %437 = vst [vmem:[%s435] sm:%s427] %v436
              $region113: #{custom-call.22} parent=107 // loop_footer
                %s433 = sadd.s32 1, %s429
              $region114: #{custom-call.22} parent=107 // loop_footer_branch
                %428 = sbr.rel target = $region110
              $region115: #{custom-call.22} parent=107 // loop_exit
                _
            $region108: #{custom-call.22} parent=99 // pred_fallthru
              _
          $region100: #{custom-call.22} parent=95 // pred_fallthru
            _
          %452 = vnop
        $region96: #{custom-call.22} parent=49 // pred_fallthru
          _
      $region50: #{custom-call.22} parent=5 // pred_fallthru
        _
      %p453 = scmp.le.s32.totalorder 2, %s9
      // Predicated region
      $region127: #{custom-call.22} parent=5 // pred_check
        %p454 = pneg %p453
      $region128: #{custom-call.22} parent=5 // pred_check_branch
        %456 = sbr.rel (%p454) target = $region130
      $region129: #{custom-call.22} parent=5 // pred_region
        %s457 = ssub.s32 %s9, 2
        %s458 = sand.u32 %s15, 1
        %s459 = sand.u32 %s15, 1
        %s460 = smul.addr %s459, 4
        %s461 = scalar_lea.vmem [#allocation3], %s460
        // Predicated region
        $region131: #{custom-call.22} parent=129 // pred_check
          %p462 = pneg %p40
        $region132: #{custom-call.22} parent=129 // pred_check_branch
          %464 = sbr.rel (%p462) target = $region134
        $region133: #{custom-call.22} parent=129 // pred_region
          %s465 = sand.u32 %s25, 1
          %s466 = scalar_lea.sflag [#allocation6], %s465
          %s467 = sand.u32 %s25, 1
          %s468 = smul.addr %s467, 2
          %s469 = scalar_lea.vmem [#allocation5], %s468
          %470 = dma.done %s466, 32
        $region134: #{custom-call.22} parent=129 // pred_fallthru
          _
        // Predicated region
        $region135: #{custom-call.22} parent=129 // pred_check
          %p471 = pneg %p68
        $region136: #{custom-call.22} parent=129 // pred_check_branch
          %473 = sbr.rel (%p471) target = $region138
        $region137: #{custom-call.22} parent=129 // pred_region
          %s474 = sand.u32 %s53, 1
          %s475 = sand.u32 %s53, 1
          %s476 = smul.addr %s475, 2
          %s477 = scalar_lea.vmem [#allocation8], %s476
        $region138: #{custom-call.22} parent=129 // pred_fallthru
          _
      $region130: #{custom-call.22} parent=5 // pred_fallthru
        _
    $region6: #{custom-call.22} parent=1 // loop_footer
      %s13 = sadd.s32 1, %s9
    $region7: #{custom-call.22} parent=1 // loop_footer_branch
      %8 = sbr.rel target = $region3
    $region8: #{custom-call.22} parent=1 // loop_exit
      _
    %478 = vsyncpa [#allocation6], 1
    %s479 = scalar_lea.sflag [#allocation6], 1
    %480 = vsyncpa %s479, 1

// kernel: custom-call.23
$region0: #{custom-call.23}
  %s0 = inlined_call_operand.vmem [shape: f32[2,1,4,4], index: 0, kind: input, shape index: {}]
  %s1 = inlined_call_operand.vmem [shape: f32[2,1,4,4], index: 1, kind: output, shape index: {}]
  $region1: #{custom-call.23} parent=0
    #allocation0 [shape = 'u8[4096]{0}', space=vmem, size = 0x1000, scoped, tag = 'operand span for operand 0']
    #allocation1 [shape = 'u8[4096]{0}', space=vmem, size = 0x1000, scoped, tag = 'packed  for operand 0']
    #allocation2 [shape = 'u8[4096]{0}', space=vmem, size = 0x1000, scoped, tag = 'operand span for operand 1']
    #allocation3 [shape = 'u8[4096]{0}', space=vmem, size = 0x1000, scoped, tag = 'packed  for operand 1']
    loop: start=0, step=1, limit=4
    $region2: #{custom-call.23} parent=1 // loop_pre_header
      _
    $region3: #{custom-call.23} parent=1 // loop_header
      %s3 = sphi 0, %s7
      %p4 = scmp.ge.s32.totalorder %s3, 4
      %s10 = sphi 0, %s36
      %s11 = sphi 0, %s32
      %s12 = sphi 0, %s28
      %s13 = sphi 0, %s24
      %s14 = sphi 0, %s10
      %s15 = sphi 0, %s11
      %s16 = sphi 0, %s12
      %s17 = sphi 0, %s13
      %s18 = sphi 0, %s14
      %s19 = sphi 0, %s15
      %s20 = sphi 0, %s16
      %s21 = sphi 0, %s17
    $region4: #{custom-call.23} parent=1 // loop_header_branch
      %6 = sbr.rel (%p4) target = $region8
    $region5: #{custom-call.23} parent=1 // loop_body
      %s8 = ssub.s32 %s3, 1
      %s9 = ssub.s32 %s3, 2
      %s22 = sadd.s32 1, %s13
      %p23 = scmp.ge.s32.totalorder %s22, 1
      %s24 = scalar_select %p23, 0, %s22
      %s25 = sadd.s32 1, %s12
      %s26 = scalar_select %p23, %s25, %s12
      %p27 = scmp.ge.s32.totalorder %s26, 1
      %s28 = scalar_select %p27, 0, %s26
      %s29 = sadd.s32 1, %s11
      %s30 = scalar_select %p27, %s29, %s11
      %p31 = scmp.ge.s32.totalorder %s30, 1
      %s32 = scalar_select %p31, 0, %s30
      %s33 = sadd.s32 1, %s10
      %s34 = scalar_select %p31, %s33, %s10
      %p35 = scmp.ge.s32.totalorder %s34, 2
      %s36 = scalar_select %p35, 0, %s34
      %p37 = scmp.le.s32.totalorder 1, %s3
      %p38 = scmp.lt.s32.totalorder %s3, 3
      %p39 = pnand %p37, %p38
      %p40 = pneg %p39
      // Predicated region
      $region9: #{custom-call.23} parent=5 // pred_check
        _
      $region10: #{custom-call.23} parent=5 // pred_check_branch
        %42 = sbr.rel (%p39) target = $region12
      $region11: #{custom-call.23} parent=5 // pred_region
        %s43 = ssub.s32 %s3, 1
      $region12: #{custom-call.23} parent=5 // pred_fallthru
        _
      %p44 = scmp.lt.s32.totalorder %s3, 2
      // Predicated region
      $region13: #{custom-call.23} parent=5 // pred_check
        %p45 = pneg %p44
      $region14: #{custom-call.23} parent=5 // pred_check_branch
        %47 = sbr.rel (%p45) target = $region16
      $region15: #{custom-call.23} parent=5 // pred_region
        %s48 = sand.u32 %s3, 1
        %s49 = sand.u32 %s3, 1
        %s50 = smul.addr %s49, 4
        %s51 = scalar_lea.vmem [#allocation1], %s50
        %s52 = sadd.s32 %s13, %s12
        %s53 = sadd.s32 %s52, %s11
        %s54 = sadd.s32 %s53, %s10
        %s55 = smul.addr %s54, 4
        %s56 = scalar_lea.vmem %s0, %s55
        // Predicated region
        $region17: #{custom-call.23} parent=15 // pred_check
          _
        $region18: #{custom-call.23} parent=15 // pred_check_branch
          %58 = sbr.rel (0) target = $region20
        $region19: #{custom-call.23} parent=15 // pred_region
          // Predicated region
          $region21: #{custom-call.23} parent=19 // pred_check
            _
          $region22: #{custom-call.23} parent=19 // pred_check_branch
            %60 = sbr.rel target = $region24
          $region23: #{custom-call.23} parent=19 // pred_region
            // Predicated region
            $region36: #{custom-call.23} parent=23 // pred_check
              _
            $region37: #{custom-call.23} parent=23 // pred_check_branch
              %76 = sbr.rel (0) target = $region39
            $region38: #{custom-call.23} parent=23 // pred_region
              %s78 = ssub.s32 16, 1
              loop: start=0, step=1, limit=1
              $region40: #{custom-call.23} parent=38 // loop_pre_header
                _
              $region41: #{custom-call.23} parent=38 // loop_header
                %s80 = sphi 0, %s84
                %p81 = scmp.ge.s32.totalorder %s80, 1
                %s85 = sphi %s56, %s56
                %s86 = sphi %s51, %s51
              $region42: #{custom-call.23} parent=38 // loop_header_branch
                %83 = sbr.rel (%p81) target = $region46
              $region43: #{custom-call.23} parent=38 // loop_body
                %v87 = vld [vmem:[%s85] sm:%s78]
                %88 = vst [vmem:[%s86] sm:%s78] %v87
              $region44: #{custom-call.23} parent=38 // loop_footer
                %s84 = sadd.s32 1, %s80
              $region45: #{custom-call.23} parent=38 // loop_footer_branch
                %79 = sbr.rel target = $region41
              $region46: #{custom-call.23} parent=38 // loop_exit
                _
            $region39: #{custom-call.23} parent=23 // pred_fallthru
              _
          $region24: #{custom-call.23} parent=19 // pred_fallthru
            _
          // Predicated region
          $region25: #{custom-call.23} parent=19 // pred_check
            _
          $region26: #{custom-call.23} parent=19 // pred_check_branch
            %62 = sbr.rel (0) target = $region28
          $region27: #{custom-call.23} parent=19 // pred_region
            %s64 = ssub.s32 16, 1
            loop: start=0, step=1, limit=1
            $region29: #{custom-call.23} parent=27 // loop_pre_header
              _
            $region30: #{custom-call.23} parent=27 // loop_header
              %s66 = sphi 0, %s70
              %p67 = scmp.ge.s32.totalorder %s66, 1
              %s71 = sphi %s56, %s56
              %s72 = sphi %s51, %s51
            $region31: #{custom-call.23} parent=27 // loop_header_branch
              %69 = sbr.rel (%p67) target = $region35
            $region32: #{custom-call.23} parent=27 // loop_body
              %v73 = vld [vmem:[%s71] sm:%s64]
              %74 = vst [vmem:[%s72] sm:%s64] %v73
            $region33: #{custom-call.23} parent=27 // loop_footer
              %s70 = sadd.s32 1, %s66
            $region34: #{custom-call.23} parent=27 // loop_footer_branch
              %65 = sbr.rel target = $region30
            $region35: #{custom-call.23} parent=27 // loop_exit
              _
          $region28: #{custom-call.23} parent=19 // pred_fallthru
            _
        $region20: #{custom-call.23} parent=15 // pred_fallthru
          _
        %89 = vnop
      $region16: #{custom-call.23} parent=5 // pred_fallthru
        _
      %p90 = scmp.le.s32.totalorder 1, %s3
      %p91 = scmp.lt.s32.totalorder %s3, 3
      %p92 = pnand %p90, %p91
      %p93 = pneg %p92
      // Predicated region
      $region47: #{custom-call.23} parent=5 // pred_check
        _
      $region48: #{custom-call.23} parent=5 // pred_check_branch
        %95 = sbr.rel (%p92) target = $region50
      $region49: #{custom-call.23} parent=5 // pred_region
        #allocation4 [shape = 'f32[4,4]{1,0}', space=vmem, size = 0x1000, scoped, tag = 'rescaled input a']
        %s96 = ssub.s32 %s3, 1
        %s97 = sand.u32 %s8, 1
        %s98 = sand.u32 %s8, 1
        %s99 = smul.addr %s98, 4
        %s100 = scalar_lea.vmem [#allocation1], %s99
        %s101 = sand.u32 %s8, 1
        %s102 = sand.u32 %s8, 1
        %s103 = smul.addr %s102, 4
        %s104 = scalar_lea.vmem [#allocation1], %s103
        %s105 = sand.u32 %s8, 1
        %s106 = sand.u32 %s8, 1
        %s107 = smul.addr %s106, 4
        %s108 = scalar_lea.vmem [#allocation3], %s107
        %s110 = sshll.u32 1, 4
        %s111 = ssub.s32 %s110, 1
        %v112 = vld [vmem:[%s104] sm:%s111]
        %113 = vst [vmem:[#allocation0] sm:%s111] %v112
        %v114 = vlaneseq
        %v115 = vand.u32 %v114, 127
        %vm116 = vcmp.lt.s32.totalorder %v115, 4
        %v117 = vlaneseq
        %v118 = vshrl.u32 %v117, 7
        %vm120 = vcmp.eq.s32.totalorder %v118, %v115
        %v121 = vld [vmem:[#allocation0] sm:$0xff]
        %v122 = vsel %vm120, %v121, 0.0
        %123 = vadd.xlane.f32.xlu0 %v122
        %v124 = vpop.xlane.xlu0 %123
        %vm125 = vcmp.le.s32.totalorder %v118, %v115
        %vm126 = vmand %vm125, %vm116
        %v127 = vsel %vm126, %v121, 0.0
        %v128 = vrcp.pop %v124
        %v129 = vmul.f32 %v127, %v128
        %130 = vst [vmem:[#allocation4] sm:$0xff] %v129
        %v131 = vlaneseq
        %v132 = vand.u32 %v131, 127
        %v133 = vlaneseq
        %v134 = vshrl.u32 %v133, 7
        %vm136 = vcmp.eq.s32.totalorder %v132, %v134
        %v137 = vlaneseq
        %v138 = vand.u32 %v137, 127
        %vm139 = vcmp.eq.s32.totalorder %v138, 3
        %v140 = vsel %vm139, 1.0, -1.0
        %v141 = vsel %vm136, %v140, 0.0
        %s142 = scalar_lea.vmem [#allocation4], 2
        %v143 = vld [vmem:[%s142] ss:$0 sm:$0xff]
        %v144 = vxor.u32 %v143, 2147483648
        %v145 = vlaneseq
        %v146 = vand.u32 %v145, 127
        %vm147 = vcmp.eq.s32.totalorder %v146, 2
        %v148 = vmul.f32 %v144, %v141
        %149 = vadd.xlane.f32.xlu0 %v148
        %v150 = vpop.xlane.xlu0 %149
        %v151 = vsel %vm147, %v150, %v141
        %s152 = scalar_lea.vmem [#allocation4], 1
        %v153 = vld [vmem:[%s152] ss:$0 sm:$0xff]
        %v154 = vxor.u32 %v153, 2147483648
        %v155 = vlaneseq
        %v156 = vand.u32 %v155, 127
        %vm157 = vcmp.eq.s32.totalorder %v156, 1
        %v158 = vmul.f32 %v154, %v151
        %159 = vadd.xlane.f32.xlu0 %v158
        %v160 = vpop.xlane.xlu0 %159
        %v161 = vsel %vm157, %v160, %v151
        %v162 = vld [vmem:[#allocation4] ss:$0 sm:$0xff]
        %v163 = vxor.u32 %v162, 2147483648
        %v164 = vlaneseq
        %v165 = vand.u32 %v164, 127
        %vm166 = vcmp.eq.s32.totalorder %v165, 0
        %v167 = vmul.f32 %v163, %v161
        %168 = vadd.xlane.f32.xlu0 %v167
        %v169 = vpop.xlane.xlu0 %168
        %v170 = vsel %vm166, %v169, %v161
        %v171 = vrcp.pop %v124
        %v172 = vmul.f32 %v170, %v171
        %vm173 = vweird.f32 %v124
        %v174 = vsel %vm173, %v170, %v172
        %175 = vst [vmem:[#allocation2] sm:$0xff] %v174
        %s177 = sshll.u32 1, 4
        %s178 = ssub.s32 %s177, 1
        %v180 = vld [vmem:[#allocation2] sm:%s178]
        %s181 = sshll.u32 1, 4
        %s182 = ssub.s32 %s181, 1
        %183 = vst [vmem:[%s108] sm:%s182] %v180
        %s184 = sand.u32 %s8, 1
        %s185 = sand.u32 %s8, 1
        %s186 = smul.addr %s185, 4
        %s187 = scalar_lea.vmem [#allocation3], %s186
        %s188 = sadd.s32 %s17, %s16
        %s189 = sadd.s32 %s188, %s15
        %s190 = sadd.s32 %s189, %s14
        %s191 = smul.addr %s190, 4
        %s192 = scalar_lea.vmem %s1, %s191
        // Predicated region
        $region51: #{custom-call.23} parent=49 // pred_check
          _
        $region52: #{custom-call.23} parent=49 // pred_check_branch
          %194 = sbr.rel (0) target = $region54
        $region53: #{custom-call.23} parent=49 // pred_region
          // Predicated region
          $region55: #{custom-call.23} parent=53 // pred_check
            _
          $region56: #{custom-call.23} parent=53 // pred_check_branch
            %196 = sbr.rel target = $region58
          $region57: #{custom-call.23} parent=53 // pred_region
            // Predicated region
            $region70: #{custom-call.23} parent=57 // pred_check
              _
            $region71: #{custom-call.23} parent=57 // pred_check_branch
              %212 = sbr.rel (0) target = $region73
            $region72: #{custom-call.23} parent=57 // pred_region
              %s214 = ssub.s32 16, 1
              loop: start=0, step=1, limit=1
              $region74: #{custom-call.23} parent=72 // loop_pre_header
                _
              $region75: #{custom-call.23} parent=72 // loop_header
                %s216 = sphi 0, %s220
                %p217 = scmp.ge.s32.totalorder %s216, 1
                %s221 = sphi %s187, %s187
                %s222 = sphi %s192, %s192
              $region76: #{custom-call.23} parent=72 // loop_header_branch
                %219 = sbr.rel (%p217) target = $region80
              $region77: #{custom-call.23} parent=72 // loop_body
                %v223 = vld [vmem:[%s221] sm:%s214]
                %224 = vst [vmem:[%s222] sm:%s214] %v223
              $region78: #{custom-call.23} parent=72 // loop_footer
                %s220 = sadd.s32 1, %s216
              $region79: #{custom-call.23} parent=72 // loop_footer_branch
                %215 = sbr.rel target = $region75
              $region80: #{custom-call.23} parent=72 // loop_exit
                _
            $region73: #{custom-call.23} parent=57 // pred_fallthru
              _
          $region58: #{custom-call.23} parent=53 // pred_fallthru
            _
          // Predicated region
          $region59: #{custom-call.23} parent=53 // pred_check
            _
          $region60: #{custom-call.23} parent=53 // pred_check_branch
            %198 = sbr.rel (0) target = $region62
          $region61: #{custom-call.23} parent=53 // pred_region
            %s200 = ssub.s32 16, 1
            loop: start=0, step=1, limit=1
            $region63: #{custom-call.23} parent=61 // loop_pre_header
              _
            $region64: #{custom-call.23} parent=61 // loop_header
              %s202 = sphi 0, %s206
              %p203 = scmp.ge.s32.totalorder %s202, 1
              %s207 = sphi %s187, %s187
              %s208 = sphi %s192, %s192
            $region65: #{custom-call.23} parent=61 // loop_header_branch
              %205 = sbr.rel (%p203) target = $region69
            $region66: #{custom-call.23} parent=61 // loop_body
              %v209 = vld [vmem:[%s207] sm:%s200]
              %210 = vst [vmem:[%s208] sm:%s200] %v209
            $region67: #{custom-call.23} parent=61 // loop_footer
              %s206 = sadd.s32 1, %s202
            $region68: #{custom-call.23} parent=61 // loop_footer_branch
              %201 = sbr.rel target = $region64
            $region69: #{custom-call.23} parent=61 // loop_exit
              _
          $region62: #{custom-call.23} parent=53 // pred_fallthru
            _
        $region54: #{custom-call.23} parent=49 // pred_fallthru
          _
        %225 = vnop
      $region50: #{custom-call.23} parent=5 // pred_fallthru
        _
      %p226 = scmp.le.s32.totalorder 2, %s3
      // Predicated region
      $region81: #{custom-call.23} parent=5 // pred_check
        %p227 = pneg %p226
      $region82: #{custom-call.23} parent=5 // pred_check_branch
        %229 = sbr.rel (%p227) target = $region84
      $region83: #{custom-call.23} parent=5 // pred_region
        %s230 = ssub.s32 %s3, 2
        %s231 = sand.u32 %s9, 1
        %s232 = sand.u32 %s9, 1
        %s233 = smul.addr %s232, 4
        %s234 = scalar_lea.vmem [#allocation3], %s233
      $region84: #{custom-call.23} parent=5 // pred_fallthru
        _
    $region6: #{custom-call.23} parent=1 // loop_footer
      %s7 = sadd.s32 1, %s3
    $region7: #{custom-call.23} parent=1 // loop_footer_branch
      %2 = sbr.rel target = $region3
    $region8: #{custom-call.23} parent=1 // loop_exit
      _

// kernel: custom-call.24
$region0: #{custom-call.24}
  %s0 = inlined_call_operand.vmem [shape: f32[2,1,4,4], index: 0, kind: input, shape index: {}]
  %s1 = inlined_call_operand.vmem [shape: f32[2,1,4,4], index: 1, kind: output, shape index: {}]
  $region1: #{custom-call.24} parent=0
    #allocation0 [shape = 'u8[4096]{0}', space=vmem, size = 0x1000, scoped, tag = 'operand span for operand 0']
    #allocation1 [shape = 'u8[4096]{0}', space=vmem, size = 0x1000, scoped, tag = 'packed  for operand 0']
    #allocation2 [shape = 'u8[4096]{0}', space=vmem, size = 0x1000, scoped, tag = 'operand span for operand 1']
    #allocation3 [shape = 'u8[4096]{0}', space=vmem, size = 0x1000, scoped, tag = 'packed  for operand 1']
    loop: start=0, step=1, limit=4
    $region2: #{custom-call.24} parent=1 // loop_pre_header
      _
    $region3: #{custom-call.24} parent=1 // loop_header
      %s3 = sphi 0, %s7
      %p4 = scmp.ge.s32.totalorder %s3, 4
      %s10 = sphi 0, %s36
      %s11 = sphi 0, %s32
      %s12 = sphi 0, %s28
      %s13 = sphi 0, %s24
      %s14 = sphi 0, %s10
      %s15 = sphi 0, %s11
      %s16 = sphi 0, %s12
      %s17 = sphi 0, %s13
      %s18 = sphi 0, %s14
      %s19 = sphi 0, %s15
      %s20 = sphi 0, %s16
      %s21 = sphi 0, %s17
    $region4: #{custom-call.24} parent=1 // loop_header_branch
      %6 = sbr.rel (%p4) target = $region8
    $region5: #{custom-call.24} parent=1 // loop_body
      %s8 = ssub.s32 %s3, 1
      %s9 = ssub.s32 %s3, 2
      %s22 = sadd.s32 1, %s13
      %p23 = scmp.ge.s32.totalorder %s22, 1
      %s24 = scalar_select %p23, 0, %s22
      %s25 = sadd.s32 1, %s12
      %s26 = scalar_select %p23, %s25, %s12
      %p27 = scmp.ge.s32.totalorder %s26, 1
      %s28 = scalar_select %p27, 0, %s26
      %s29 = sadd.s32 1, %s11
      %s30 = scalar_select %p27, %s29, %s11
      %p31 = scmp.ge.s32.totalorder %s30, 1
      %s32 = scalar_select %p31, 0, %s30
      %s33 = sadd.s32 1, %s10
      %s34 = scalar_select %p31, %s33, %s10
      %p35 = scmp.ge.s32.totalorder %s34, 2
      %s36 = scalar_select %p35, 0, %s34
      %p37 = scmp.le.s32.totalorder 1, %s3
      %p38 = scmp.lt.s32.totalorder %s3, 3
      %p39 = pnand %p37, %p38
      %p40 = pneg %p39
      // Predicated region
      $region9: #{custom-call.24} parent=5 // pred_check
        _
      $region10: #{custom-call.24} parent=5 // pred_check_branch
        %42 = sbr.rel (%p39) target = $region12
      $region11: #{custom-call.24} parent=5 // pred_region
        %s43 = ssub.s32 %s3, 1
      $region12: #{custom-call.24} parent=5 // pred_fallthru
        _
      %p44 = scmp.lt.s32.totalorder %s3, 2
      // Predicated region
      $region13: #{custom-call.24} parent=5 // pred_check
        %p45 = pneg %p44
      $region14: #{custom-call.24} parent=5 // pred_check_branch
        %47 = sbr.rel (%p45) target = $region16
      $region15: #{custom-call.24} parent=5 // pred_region
        %s48 = sand.u32 %s3, 1
        %s49 = sand.u32 %s3, 1
        %s50 = smul.addr %s49, 4
        %s51 = scalar_lea.vmem [#allocation1], %s50
        %s52 = sadd.s32 %s13, %s12
        %s53 = sadd.s32 %s52, %s11
        %s54 = sadd.s32 %s53, %s10
        %s55 = smul.addr %s54, 4
        %s56 = scalar_lea.vmem %s0, %s55
        // Predicated region
        $region17: #{custom-call.24} parent=15 // pred_check
          _
        $region18: #{custom-call.24} parent=15 // pred_check_branch
          %58 = sbr.rel (0) target = $region20
        $region19: #{custom-call.24} parent=15 // pred_region
          // Predicated region
          $region21: #{custom-call.24} parent=19 // pred_check
            _
          $region22: #{custom-call.24} parent=19 // pred_check_branch
            %60 = sbr.rel target = $region24
          $region23: #{custom-call.24} parent=19 // pred_region
            // Predicated region
            $region36: #{custom-call.24} parent=23 // pred_check
              _
            $region37: #{custom-call.24} parent=23 // pred_check_branch
              %76 = sbr.rel (0) target = $region39
            $region38: #{custom-call.24} parent=23 // pred_region
              %s78 = ssub.s32 16, 1
              loop: start=0, step=1, limit=1
              $region40: #{custom-call.24} parent=38 // loop_pre_header
                _
              $region41: #{custom-call.24} parent=38 // loop_header
                %s80 = sphi 0, %s84
                %p81 = scmp.ge.s32.totalorder %s80, 1
                %s85 = sphi %s56, %s56
                %s86 = sphi %s51, %s51
              $region42: #{custom-call.24} parent=38 // loop_header_branch
                %83 = sbr.rel (%p81) target = $region46
              $region43: #{custom-call.24} parent=38 // loop_body
                %v87 = vld [vmem:[%s85] sm:%s78]
                %88 = vst [vmem:[%s86] sm:%s78] %v87
              $region44: #{custom-call.24} parent=38 // loop_footer
                %s84 = sadd.s32 1, %s80
              $region45: #{custom-call.24} parent=38 // loop_footer_branch
                %79 = sbr.rel target = $region41
              $region46: #{custom-call.24} parent=38 // loop_exit
                _
            $region39: #{custom-call.24} parent=23 // pred_fallthru
              _
          $region24: #{custom-call.24} parent=19 // pred_fallthru
            _
          // Predicated region
          $region25: #{custom-call.24} parent=19 // pred_check
            _
          $region26: #{custom-call.24} parent=19 // pred_check_branch
            %62 = sbr.rel (0) target = $region28
          $region27: #{custom-call.24} parent=19 // pred_region
            %s64 = ssub.s32 16, 1
            loop: start=0, step=1, limit=1
            $region29: #{custom-call.24} parent=27 // loop_pre_header
              _
            $region30: #{custom-call.24} parent=27 // loop_header
              %s66 = sphi 0, %s70
              %p67 = scmp.ge.s32.totalorder %s66, 1
              %s71 = sphi %s56, %s56
              %s72 = sphi %s51, %s51
            $region31: #{custom-call.24} parent=27 // loop_header_branch
              %69 = sbr.rel (%p67) target = $region35
            $region32: #{custom-call.24} parent=27 // loop_body
              %v73 = vld [vmem:[%s71] sm:%s64]
              %74 = vst [vmem:[%s72] sm:%s64] %v73
            $region33: #{custom-call.24} parent=27 // loop_footer
              %s70 = sadd.s32 1, %s66
            $region34: #{custom-call.24} parent=27 // loop_footer_branch
              %65 = sbr.rel target = $region30
            $region35: #{custom-call.24} parent=27 // loop_exit
              _
          $region28: #{custom-call.24} parent=19 // pred_fallthru
            _
        $region20: #{custom-call.24} parent=15 // pred_fallthru
          _
        %89 = vnop
      $region16: #{custom-call.24} parent=5 // pred_fallthru
        _
      %p90 = scmp.le.s32.totalorder 1, %s3
      %p91 = scmp.lt.s32.totalorder %s3, 3
      %p92 = pnand %p90, %p91
      %p93 = pneg %p92
      // Predicated region
      $region47: #{custom-call.24} parent=5 // pred_check
        _
      $region48: #{custom-call.24} parent=5 // pred_check_branch
        %95 = sbr.rel (%p92) target = $region50
      $region49: #{custom-call.24} parent=5 // pred_region
        #allocation4 [shape = 'f32[4,4]{1,0}', space=vmem, size = 0x1000, scoped, tag = 'rescaled input a']
        %s96 = ssub.s32 %s3, 1
        %s97 = sand.u32 %s8, 1
        %s98 = sand.u32 %s8, 1
        %s99 = smul.addr %s98, 4
        %s100 = scalar_lea.vmem [#allocation1], %s99
        %s101 = sand.u32 %s8, 1
        %s102 = sand.u32 %s8, 1
        %s103 = smul.addr %s102, 4
        %s104 = scalar_lea.vmem [#allocation1], %s103
        %s105 = sand.u32 %s8, 1
        %s106 = sand.u32 %s8, 1
        %s107 = smul.addr %s106, 4
        %s108 = scalar_lea.vmem [#allocation3], %s107
        %s110 = sshll.u32 1, 4
        %s111 = ssub.s32 %s110, 1
        %v112 = vld [vmem:[%s104] sm:%s111]
        %113 = vst [vmem:[#allocation0] sm:%s111] %v112
        %v114 = vlaneseq
        %v115 = vand.u32 %v114, 127
        %vm116 = vcmp.lt.s32.totalorder %v115, 4
        %v117 = vlaneseq
        %v118 = vshrl.u32 %v117, 7
        %vm120 = vcmp.eq.s32.totalorder %v118, %v115
        %v121 = vld [vmem:[#allocation0] sm:$0xff]
        %v122 = vsel %vm120, %v121, 0.0
        %123 = vadd.xlane.f32.xlu0 %v122
        %v124 = vpop.xlane.xlu0 %123
        %vm125 = vcmp.ge.s32.totalorder %v118, %v115
        %vm126 = vmand %vm125, %vm116
        %v127 = vsel %vm126, %v121, 0.0
        %v128 = vrcp.pop %v124
        %v129 = vmul.f32 %v127, %v128
        %130 = vst [vmem:[#allocation4] sm:$0xff] %v129
        %v131 = vlaneseq
        %v132 = vand.u32 %v131, 127
        %v133 = vlaneseq
        %v134 = vshrl.u32 %v133, 7
        %vm136 = vcmp.eq.s32.totalorder %v132, %v134
        %v137 = vlaneseq
        %v138 = vand.u32 %v137, 127
        %vm139 = vcmp.eq.s32.totalorder %v138, 0
        %v140 = vsel %vm139, 1.0, -1.0
        %v141 = vsel %vm136, %v140, 0.0
        %s142 = scalar_lea.vmem [#allocation4], 1
        %v143 = vld [vmem:[%s142] ss:$0 sm:$0xff]
        %v144 = vxor.u32 %v143, 2147483648
        %v145 = vlaneseq
        %v146 = vand.u32 %v145, 127
        %vm147 = vcmp.eq.s32.totalorder %v146, 1
        %v148 = vmul.f32 %v144, %v141
        %149 = vadd.xlane.f32.xlu0 %v148
        %v150 = vpop.xlane.xlu0 %149
        %v151 = vsel %vm147, %v150, %v141
        %s152 = scalar_lea.vmem [#allocation4], 2
        %v153 = vld [vmem:[%s152] ss:$0 sm:$0xff]
        %v154 = vxor.u32 %v153, 2147483648
        %v155 = vlaneseq
        %v156 = vand.u32 %v155, 127
        %vm157 = vcmp.eq.s32.totalorder %v156, 2
        %v158 = vmul.f32 %v154, %v151
        %159 = vadd.xlane.f32.xlu0 %v158
        %v160 = vpop.xlane.xlu0 %159
        %v161 = vsel %vm157, %v160, %v151
        %s162 = scalar_lea.vmem [#allocation4], 3
        %v163 = vld [vmem:[%s162] ss:$0 sm:$0xff]
        %v164 = vxor.u32 %v163, 2147483648
        %v165 = vlaneseq
        %v166 = vand.u32 %v165, 127
        %vm167 = vcmp.eq.s32.totalorder %v166, 3
        %v168 = vmul.f32 %v164, %v161
        %169 = vadd.xlane.f32.xlu0 %v168
        %v170 = vpop.xlane.xlu0 %169
        %v171 = vsel %vm167, %v170, %v161
        %v172 = vrcp.pop %v124
        %v173 = vmul.f32 %v171, %v172
        %vm174 = vweird.f32 %v124
        %v175 = vsel %vm174, %v171, %v173
        %176 = vst [vmem:[#allocation2] sm:$0xff] %v175
        %s178 = sshll.u32 1, 4
        %s179 = ssub.s32 %s178, 1
        %v181 = vld [vmem:[#allocation2] sm:%s179]
        %s182 = sshll.u32 1, 4
        %s183 = ssub.s32 %s182, 1
        %184 = vst [vmem:[%s108] sm:%s183] %v181
        %s185 = sand.u32 %s8, 1
        %s186 = sand.u32 %s8, 1
        %s187 = smul.addr %s186, 4
        %s188 = scalar_lea.vmem [#allocation3], %s187
        %s189 = sadd.s32 %s17, %s16
        %s190 = sadd.s32 %s189, %s15
        %s191 = sadd.s32 %s190, %s14
        %s192 = smul.addr %s191, 4
        %s193 = scalar_lea.vmem %s1, %s192
        // Predicated region
        $region51: #{custom-call.24} parent=49 // pred_check
          _
        $region52: #{custom-call.24} parent=49 // pred_check_branch
          %195 = sbr.rel (0) target = $region54
        $region53: #{custom-call.24} parent=49 // pred_region
          // Predicated region
          $region55: #{custom-call.24} parent=53 // pred_check
            _
          $region56: #{custom-call.24} parent=53 // pred_check_branch
            %197 = sbr.rel target = $region58
          $region57: #{custom-call.24} parent=53 // pred_region
            // Predicated region
            $region70: #{custom-call.24} parent=57 // pred_check
              _
            $region71: #{custom-call.24} parent=57 // pred_check_branch
              %213 = sbr.rel (0) target = $region73
            $region72: #{custom-call.24} parent=57 // pred_region
              %s215 = ssub.s32 16, 1
              loop: start=0, step=1, limit=1
              $region74: #{custom-call.24} parent=72 // loop_pre_header
                _
              $region75: #{custom-call.24} parent=72 // loop_header
                %s217 = sphi 0, %s221
                %p218 = scmp.ge.s32.totalorder %s217, 1
                %s222 = sphi %s188, %s188
                %s223 = sphi %s193, %s193
              $region76: #{custom-call.24} parent=72 // loop_header_branch
                %220 = sbr.rel (%p218) target = $region80
              $region77: #{custom-call.24} parent=72 // loop_body
                %v224 = vld [vmem:[%s222] sm:%s215]
                %225 = vst [vmem:[%s223] sm:%s215] %v224
              $region78: #{custom-call.24} parent=72 // loop_footer
                %s221 = sadd.s32 1, %s217
              $region79: #{custom-call.24} parent=72 // loop_footer_branch
                %216 = sbr.rel target = $region75
              $region80: #{custom-call.24} parent=72 // loop_exit
                _
            $region73: #{custom-call.24} parent=57 // pred_fallthru
              _
          $region58: #{custom-call.24} parent=53 // pred_fallthru
            _
          // Predicated region
          $region59: #{custom-call.24} parent=53 // pred_check
            _
          $region60: #{custom-call.24} parent=53 // pred_check_branch
            %199 = sbr.rel (0) target = $region62
          $region61: #{custom-call.24} parent=53 // pred_region
            %s201 = ssub.s32 16, 1
            loop: start=0, step=1, limit=1
            $region63: #{custom-call.24} parent=61 // loop_pre_header
              _
            $region64: #{custom-call.24} parent=61 // loop_header
              %s203 = sphi 0, %s207
              %p204 = scmp.ge.s32.totalorder %s203, 1
              %s208 = sphi %s188, %s188
              %s209 = sphi %s193, %s193
            $region65: #{custom-call.24} parent=61 // loop_header_branch
              %206 = sbr.rel (%p204) target = $region69
            $region66: #{custom-call.24} parent=61 // loop_body
              %v210 = vld [vmem:[%s208] sm:%s201]
              %211 = vst [vmem:[%s209] sm:%s201] %v210
            $region67: #{custom-call.24} parent=61 // loop_footer
              %s207 = sadd.s32 1, %s203
            $region68: #{custom-call.24} parent=61 // loop_footer_branch
              %202 = sbr.rel target = $region64
            $region69: #{custom-call.24} parent=61 // loop_exit
              _
          $region62: #{custom-call.24} parent=53 // pred_fallthru
            _
        $region54: #{custom-call.24} parent=49 // pred_fallthru
          _
        %226 = vnop
      $region50: #{custom-call.24} parent=5 // pred_fallthru
        _
      %p227 = scmp.le.s32.totalorder 2, %s3
      // Predicated region
      $region81: #{custom-call.24} parent=5 // pred_check
        %p228 = pneg %p227
      $region82: #{custom-call.24} parent=5 // pred_check_branch
        %230 = sbr.rel (%p228) target = $region84
      $region83: #{custom-call.24} parent=5 // pred_region
        %s231 = ssub.s32 %s3, 2
        %s232 = sand.u32 %s9, 1
        %s233 = sand.u32 %s9, 1
        %s234 = smul.addr %s233, 4
        %s235 = scalar_lea.vmem [#allocation3], %s234
      $region84: #{custom-call.24} parent=5 // pred_fallthru
        _
    $region6: #{custom-call.24} parent=1 // loop_footer
      %s7 = sadd.s32 1, %s3
    $region7: #{custom-call.24} parent=1 // loop_footer_branch
      %2 = sbr.rel target = $region3
    $region8: #{custom-call.24} parent=1 // loop_exit
      _

// kernel: distance_points_3d.1
$region0: #{distance_points_3d.1}
  #allocation0 [shape = 'u32[]', space=smem, size = 0x4, offset = 0x4, fixed_abs, tag = 'smem constant byte address 0x4 - core index']
  #allocation1 [shape = 'u32[144,128]{1,0:T(1,128)}', space=vmem, size = 0x12000, scoped, tag = 'internal scratch']
  #allocation2 [shape = 's32[1]{0}', space=sflag, size = 0x4, scoped, tag = 'scoped memory for distance_points_3d.1']
  #allocation3 [shape = 'u8[1024]{0}', space=smem, size = 0x400, scoped, tag = 'prefetched SMEM operand 0']
  %s0 = inlined_call_operand.vmem [shape: f32[2,12], index: 0, kind: input, shape index: {}]
  %s1 = inlined_call_operand.vmem [shape: f32[2,4,32,128], index: 1, kind: input, shape index: {}]
  %s2 = inlined_call_operand.vmem [shape: f32[2,1,8,128], index: 2, kind: output, shape index: {}]
  %s3 = sld [smem:[#allocation0]]
  $region41: #{distance_points_3d.1} parent=0
    _
  %s5 = ssub.s32 1, %s3
  %s6 = scalar_select 0, %s5, %s3
  %s7 = sshll.u32 %s0, 4
  %s8 = int_to_ptr.vmem [resolvable:$true] %s7
  %10 = dma.vmem_to_smem %s8, 32, [#allocation3], [#allocation2]
  %11 = dma.done [#allocation2], 32
  %12 = sfence
  loop: start=0, step=1, limit=4
  $region2: #{distance_points_3d.1} parent=0 // loop_pre_header
    _
  $region3: #{distance_points_3d.1} parent=0 // loop_header
    %s14 = sphi 0, %s18
    %p15 = scmp.ge.s32.totalorder %s14, 4
    %s21 = sphi 0, %s40
    %s22 = sphi 0, %s36
    %s23 = sphi 0, %s32
    %s24 = sphi 0, %s21
    %s25 = sphi 0, %s22
    %s26 = sphi 0, %s23
    %s27 = sphi 0, %s24
    %s28 = sphi 0, %s25
    %s29 = sphi 0, %s26
    %s47 = sphi 0, %s49
    %s50 = sphi 0, %s47
    %s51 = sphi 0, %s50
    %s67 = sphi 0, %s51
    %s75 = sphi 0, %s77
    %s78 = sphi 0, %s75
    %s79 = sphi 0, %s78
    %s95 = sphi 0, %s79
  $region4: #{distance_points_3d.1} parent=0 // loop_header_branch
    %17 = sbr.rel (%p15) target = $region8
  $region5: #{distance_points_3d.1} parent=0 // loop_body
    %s19 = ssub.s32 %s14, 1
    %s20 = ssub.s32 %s14, 2
    %s30 = sadd.s32 1, %s23
    %p31 = scmp.ge.s32.totalorder %s30, 1
    %s32 = scalar_select %p31, 0, %s30
    %s33 = sadd.s32 1, %s22
    %s34 = scalar_select %p31, %s33, %s22
    %p35 = scmp.ge.s32.totalorder %s34, 1
    %s36 = scalar_select %p35, 0, %s34
    %s37 = sadd.s32 1, %s21
    %s38 = scalar_select %p35, %s37, %s21
    %p39 = scmp.ge.s32.totalorder %s38, 2
    %s40 = scalar_select %p39, 0, %s38
    %s41 = sadd.s32 %s22, %s23
    %s42 = sadd.s32 %s36, %s32
    %s43 = ssub.s32 %s21, %s40
    %s44 = ssub.s32 %s41, %s42
    %s45 = sor.u32 %s43, %s44
    %p46 = scmp.eq.s32.totalorder %s45, 0
    %s48 = sadd.s32 %s47, 1
    %s49 = scalar_select %p46, %s47, %s48
    %p52 = pneg %p46
    %p53 = scmp.eq.s32.totalorder %s14, 1
    %p54 = por %p52, %p53
    %p55 = scmp.ne.s32.totalorder %s47, %s50
    %p56 = scmp.eq.s32.totalorder %s14, 0
    %p57 = por %p55, %p56
    %p58 = scmp.ne.s32.totalorder %s47, %s50
    %p59 = scmp.eq.s32.totalorder %s19, 1
    %p60 = por %p58, %p59
    %p61 = scmp.ne.s32.totalorder %s50, %s51
    %p62 = scmp.eq.s32.totalorder %s19, 0
    %p63 = por %p61, %p62
    %p64 = scmp.ne.s32.totalorder %s50, %s51
    %p65 = scmp.eq.s32.totalorder %s20, 1
    %p66 = por %p64, %p65
    %p68 = scmp.ne.s32.totalorder %s51, %s67
    %p69 = scmp.eq.s32.totalorder %s20, 0
    %p70 = por %p68, %p69
    %s71 = ssub.s32 %s21, %s40
    %s72 = ssub.s32 %s22, %s36
    %s73 = sor.u32 %s71, %s72
    %p74 = scmp.eq.s32.totalorder %s73, 0
    %s76 = sadd.s32 %s75, 1
    %s77 = scalar_select %p74, %s75, %s76
    %p80 = pneg %p74
    %p81 = scmp.eq.s32.totalorder %s14, 1
    %p82 = por %p80, %p81
    %p83 = scmp.ne.s32.totalorder %s75, %s78
    %p84 = scmp.eq.s32.totalorder %s14, 0
    %p85 = por %p83, %p84
    %p86 = scmp.ne.s32.totalorder %s75, %s78
    %p87 = scmp.eq.s32.totalorder %s19, 1
    %p88 = por %p86, %p87
    %p89 = scmp.ne.s32.totalorder %s78, %s79
    %p90 = scmp.eq.s32.totalorder %s19, 0
    %p91 = por %p89, %p90
    %p92 = scmp.ne.s32.totalorder %s78, %s79
    %p93 = scmp.eq.s32.totalorder %s20, 1
    %p94 = por %p92, %p93
    %p96 = scmp.ne.s32.totalorder %s79, %s95
    %p97 = scmp.eq.s32.totalorder %s20, 0
    %p98 = por %p96, %p97
    %p99 = scmp.le.s32.totalorder 1, %s14
    %p100 = scmp.lt.s32.totalorder %s14, 3
    %p101 = pnand %p99, %p100
    %p102 = pneg %p101
    // Predicated region
    $region9: #{distance_points_3d.1} parent=5 // pred_check
      _
    $region10: #{distance_points_3d.1} parent=5 // pred_check_branch
      %104 = sbr.rel (%p101) target = $region12
    $region11: #{distance_points_3d.1} parent=5 // pred_region
      %s105 = ssub.s32 %s14, 1
    $region12: #{distance_points_3d.1} parent=5 // pred_fallthru
      _
    %p106 = scmp.lt.s32.totalorder %s14, 2
    // Predicated region
    $region13: #{distance_points_3d.1} parent=5 // pred_check
      %p107 = pneg %p106
    $region14: #{distance_points_3d.1} parent=5 // pred_check_branch
      %109 = sbr.rel (%p107) target = $region16
    $region15: #{distance_points_3d.1} parent=5 // pred_region
      // Predicated region
      $region17: #{distance_points_3d.1} parent=15 // pred_check
        %p110 = pneg %p57
      $region18: #{distance_points_3d.1} parent=15 // pred_check_branch
        %112 = sbr.rel (%p110) target = $region20
      $region19: #{distance_points_3d.1} parent=15 // pred_region
        %s113 = sadd.s32 %s22, %s23
        %s114 = smul.u32 4, %s113
        %p115 = scmp.lt.s32.totalorder %s21, 1
        %s116 = scalar_select %p115, %s21, 1
        %p117 = scmp.lt.s32.totalorder %s114, 3
        %s118 = scalar_select %p117, %s114, 3
        %s119 = smul.addr %s116, 16
        %s120 = sadd.s32 %s118, %s119
        %s121 = smul.addr %s120, 8
        %s122 = scalar_lea.vmem %s1, %s121
        %s123 = sadd.s32 %s22, %s23
        %s124 = smul.u32 4, %s123
      $region20: #{distance_points_3d.1} parent=15 // pred_fallthru
        _
    $region16: #{distance_points_3d.1} parent=5 // pred_fallthru
      _
    %p125 = scmp.le.s32.totalorder 1, %s14
    %p126 = scmp.lt.s32.totalorder %s14, 3
    %p127 = pnand %p125, %p126
    %p128 = pneg %p127
    // Predicated region
    $region21: #{distance_points_3d.1} parent=5 // pred_check
      _
    $region22: #{distance_points_3d.1} parent=5 // pred_check_branch
      %130 = sbr.rel (%p127) target = $region24
    $region23: #{distance_points_3d.1} parent=5 // pred_region
      %s131 = ssub.s32 %s14, 1
      %s132 = sadd.s32 %s25, %s26
      %s133 = smul.u32 4, %s132
      %p134 = scmp.lt.s32.totalorder %s24, 1
      %s135 = scalar_select %p134, %s24, 1
      %p136 = scmp.lt.s32.totalorder %s133, 3
      %s137 = scalar_select %p136, %s133, 3
      %s138 = smul.addr %s135, 16
      %s139 = sadd.s32 %s137, %s138
      %s140 = smul.addr %s139, 8
      %s141 = scalar_lea.vmem %s1, %s140
      %p142 = pneg %p63
      %p143 = pneg %p60
      %p144 = pneg %p91
      %p145 = pneg %p88
      %p146 = scmp.lt.s32.totalorder %s24, 1
      %s147 = scalar_select %p146, %s24, 1
      %p148 = scmp.lt.s32.totalorder %s25, 0
      %s149 = scalar_select %p148, %s25, 0
      %s150 = sadd.s32 %s149, %s147
      %s151 = smul.addr %s150, 8
      %s152 = scalar_lea.vmem %s2, %s151
      %s153 = sadd.s32 %s25, %s26
      %s154 = smul.u32 4, %s153
      %p155 = scmp.lt.s32.totalorder %s24, 1
      %s156 = scalar_select %p155, %s24, 1
      %p157 = scmp.lt.s32.totalorder %s154, 3
      %s158 = scalar_select %p157, %s154, 3
      %s159 = smul.addr %s156, 16
      %s160 = sadd.s32 %s158, %s159
      %s161 = smul.addr %s160, 8
      %s162 = scalar_lea.vmem %s1, %s161
      %s163 = sadd.s32 %s25, %s26
      %s164 = smul.u32 4, %s163
      %p165 = scmp.lt.s32.totalorder %s24, 1
      %s166 = scalar_select %p165, %s24, 1
      %p167 = scmp.lt.s32.totalorder %s25, 0
      %s168 = scalar_select %p167, %s25, 0
      %s169 = sadd.s32 %s168, %s166
      %s170 = smul.addr %s169, 8
      %s171 = scalar_lea.vmem %s2, %s170
      %p172 = scmp.eq.s32.totalorder %s26, 0
      // Predicated region
      $region25: #{distance_points_3d.1} parent=23 // pred_check
        %p173 = pneg %p172
      $region26: #{distance_points_3d.1} parent=23 // pred_check_branch
        %175 = sbr.rel (%p173) target = $region28
      $region27: #{distance_points_3d.1} parent=23 // pred_region
        %176 = vst [vmem:[%s171] sm:$0xff] 0.0
      $region28: #{distance_points_3d.1} parent=23 // pred_fallthru
        _
      %s177 = smul.u32 %s24, 128
      %s178 = sld [smem:[#allocation3 + %s177]]
      %s179 = sadd.s32 %s177, 1
      %s180 = sld [smem:[#allocation3 + %s179]]
      %s181 = sadd.s32 %s177, 2
      %s182 = sld [smem:[#allocation3 + %s181]]
      %s183 = sadd.s32 %s177, 3
      %s184 = sld [smem:[#allocation3 + %s183]]
      %s185 = sadd.s32 %s177, 4
      %s186 = sld [smem:[#allocation3 + %s185]]
      %s187 = sadd.s32 %s177, 5
      %s188 = sld [smem:[#allocation3 + %s187]]
      %s189 = sadd.s32 %s177, 6
      %s190 = sld [smem:[#allocation3 + %s189]]
      %s191 = sadd.s32 %s177, 7
      %s192 = sld [smem:[#allocation3 + %s191]]
      %s193 = sadd.s32 %s177, 8
      %s194 = sld [smem:[#allocation3 + %s193]]
      %s195 = sadd.s32 %s177, 9
      %s196 = sld [smem:[#allocation3 + %s195]]
      %s197 = sadd.s32 %s177, 10
      %s198 = sld [smem:[#allocation3 + %s197]]
      %s199 = sadd.s32 %s177, 11
      %s200 = sld [smem:[#allocation3 + %s199]]
      %v201 = vld [vmem:[%s162] sm:$0xff]
      %v202 = vld [vmem:[%s162 + $0x8] sm:$0xff]
      %v203 = vld [vmem:[%s162 + $0x10] sm:$0xff]
      %v204 = vld [vmem:[%s162 + $0x18] sm:$0xff]
      %s205 = sadd.s32 0, 32
      %s206 = scalar_lea.vmem %s162, %s205
      %v207 = vld [vmem:[%s206] sm:$0xff]
      %v208 = vld [vmem:[%s206 + $0x8] sm:$0xff]
      %v209 = vld [vmem:[%s206 + $0x10] sm:$0xff]
      %v210 = vld [vmem:[%s206 + $0x18] sm:$0xff]
      %s211 = sadd.s32 0, 64
      %s212 = scalar_lea.vmem %s162, %s211
      %v213 = vld [vmem:[%s212] sm:$0xff]
      %v214 = vld [vmem:[%s212 + $0x8] sm:$0xff]
      %v215 = vld [vmem:[%s212 + $0x10] sm:$0xff]
      %v216 = vld [vmem:[%s212 + $0x18] sm:$0xff]
      %v217 = vstv %s178
      %v218 = vmul.f32 %v217, %v201
      %v219 = vmul.f32 %v217, %v202
      %v220 = vmul.f32 %v217, %v203
      %v221 = vmul.f32 %v217, %v204
      %v222 = vstv %s180
      %v223 = vmul.f32 %v222, %v207
      %v224 = vmul.f32 %v222, %v208
      %v225 = vmul.f32 %v222, %v209
      %v226 = vmul.f32 %v222, %v210
      %v227 = vadd.f32 %v218, %v223
      %v228 = vadd.f32 %v219, %v224
      %v229 = vadd.f32 %v220, %v225
      %v230 = vadd.f32 %v221, %v226
      %v231 = vstv %s182
      %v232 = vmul.f32 %v231, %v213
      %v233 = vmul.f32 %v231, %v214
      %v234 = vmul.f32 %v231, %v215
      %v235 = vmul.f32 %v231, %v216
      %v236 = vadd.f32 %v227, %v232
      %v237 = vadd.f32 %v228, %v233
      %v238 = vadd.f32 %v229, %v234
      %v239 = vadd.f32 %v230, %v235
      %v240 = vstv %s184
      %v241 = vadd.f32 %v236, %v240
      %v242 = vadd.f32 %v237, %v240
      %v243 = vadd.f32 %v238, %v240
      %v244 = vadd.f32 %v239, %v240
      %v245 = vstv %s186
      %v246 = vmul.f32 %v245, %v201
      %v247 = vmul.f32 %v245, %v202
      %v248 = vmul.f32 %v245, %v203
      %v249 = vmul.f32 %v245, %v204
      %v250 = vstv %s188
      %v251 = vmul.f32 %v250, %v207
      %v252 = vmul.f32 %v250, %v208
      %v253 = vmul.f32 %v250, %v209
      %v254 = vmul.f32 %v250, %v210
      %v255 = vadd.f32 %v246, %v251
      %v256 = vadd.f32 %v247, %v252
      %v257 = vadd.f32 %v248, %v253
      %v258 = vadd.f32 %v249, %v254
      %v259 = vstv %s190
      %v260 = vmul.f32 %v259, %v213
      %v261 = vmul.f32 %v259, %v214
      %v262 = vmul.f32 %v259, %v215
      %v263 = vmul.f32 %v259, %v216
      %v264 = vadd.f32 %v255, %v260
      %v265 = vadd.f32 %v256, %v261
      %v266 = vadd.f32 %v257, %v262
      %v267 = vadd.f32 %v258, %v263
      %v268 = vstv %s192
      %v269 = vadd.f32 %v264, %v268
      %v270 = vadd.f32 %v265, %v268
      %v271 = vadd.f32 %v266, %v268
      %v272 = vadd.f32 %v267, %v268
      %v273 = vstv %s194
      %v274 = vmul.f32 %v273, %v201
      %v275 = vmul.f32 %v273, %v202
      %v276 = vmul.f32 %v273, %v203
      %v277 = vmul.f32 %v273, %v204
      %v278 = vstv %s196
      %v279 = vmul.f32 %v278, %v207
      %v280 = vmul.f32 %v278, %v208
      %v281 = vmul.f32 %v278, %v209
      %v282 = vmul.f32 %v278, %v210
      %v283 = vadd.f32 %v274, %v279
      %v284 = vadd.f32 %v275, %v280
      %v285 = vadd.f32 %v276, %v281
      %v286 = vadd.f32 %v277, %v282
      %v287 = vstv %s198
      %v288 = vmul.f32 %v287, %v213
      %v289 = vmul.f32 %v287, %v214
      %v290 = vmul.f32 %v287, %v215
      %v291 = vmul.f32 %v287, %v216
      %v292 = vadd.f32 %v283, %v288
      %v293 = vadd.f32 %v284, %v289
      %v294 = vadd.f32 %v285, %v290
      %v295 = vadd.f32 %v286, %v291
      %v296 = vstv %s200
      %v297 = vadd.f32 %v292, %v296
      %v298 = vadd.f32 %v293, %v296
      %v299 = vadd.f32 %v294, %v296
      %v300 = vadd.f32 %v295, %v296
      %v301 = vmul.f32 %v241, %v241
      %v302 = vmul.f32 %v242, %v242
      %v303 = vmul.f32 %v243, %v243
      %v304 = vmul.f32 %v244, %v244
      %v305 = vmul.f32 %v269, %v269
      %v306 = vmul.f32 %v270, %v270
      %v307 = vmul.f32 %v271, %v271
      %v308 = vmul.f32 %v272, %v272
      %v309 = vadd.f32 %v301, %v305
      %v310 = vadd.f32 %v302, %v306
      %v311 = vadd.f32 %v303, %v307
      %v312 = vadd.f32 %v304, %v308
      %v313 = vmul.f32 %v297, %v297
      %v314 = vmul.f32 %v298, %v298
      %v315 = vmul.f32 %v299, %v299
      %v316 = vmul.f32 %v300, %v300
      %v317 = vadd.f32 %v309, %v313
      %v318 = vadd.f32 %v310, %v314
      %v319 = vadd.f32 %v311, %v315
      %v320 = vadd.f32 %v312, %v316
      %v321 = vrsqrt.pop %v317
      %v322 = vmul.f32 %v317, %v321
      %vm323 = vcmp.eq.f32.partialorder %v317, inf
      %v324 = vsel %vm323, %v317, %v322
      %vm325 = vcmp.eq.f32.partialorder %v317, 0.0
      %v326 = vand.u32 %v317, 2147483648
      %v327 = vsel %vm325, %v326, %v324
      %v328 = vrsqrt.pop %v318
      %v329 = vmul.f32 %v318, %v328
      %vm330 = vcmp.eq.f32.partialorder %v318, inf
      %v331 = vsel %vm330, %v318, %v329
      %vm332 = vcmp.eq.f32.partialorder %v318, 0.0
      %v333 = vand.u32 %v318, 2147483648
      %v334 = vsel %vm332, %v333, %v331
      %v335 = vrsqrt.pop %v319
      %v336 = vmul.f32 %v319, %v335
      %vm337 = vcmp.eq.f32.partialorder %v319, inf
      %v338 = vsel %vm337, %v319, %v336
      %vm339 = vcmp.eq.f32.partialorder %v319, 0.0
      %v340 = vand.u32 %v319, 2147483648
      %v341 = vsel %vm339, %v340, %v338
      %v342 = vrsqrt.pop %v320
      %v343 = vmul.f32 %v320, %v342
      %vm344 = vcmp.eq.f32.partialorder %v320, inf
      %v345 = vsel %vm344, %v320, %v343
      %vm346 = vcmp.eq.f32.partialorder %v320, 0.0
      %v347 = vand.u32 %v320, 2147483648
      %v348 = vsel %vm346, %v347, %v345
      %v349 = vadd.f32 %v327, %v334
      %v350 = vadd.f32 %v349, %v341
      %v351 = vadd.f32 %v350, %v348
      %v352 = vadd.f32 %v351, 0.0
      %v353 = vld [vmem:[%s171] sm:$0xff]
      %v354 = vadd.f32 %v353, %v352
      %355 = vst [vmem:[%s171] sm:$0xff] %v354
      %p356 = scmp.lt.s32.totalorder %s24, 1
      %s357 = scalar_select %p356, %s24, 1
      %p358 = scmp.lt.s32.totalorder %s25, 0
      %s359 = scalar_select %p358, %s25, 0
      %s360 = sadd.s32 %s359, %s357
      %s361 = smul.addr %s360, 8
      %s362 = scalar_lea.vmem %s2, %s361
      // Predicated region
      $region29: #{distance_points_3d.1} parent=23 // pred_check
        %p363 = pneg %p88
      $region30: #{distance_points_3d.1} parent=23 // pred_check_branch
        %365 = sbr.rel (%p363) target = $region32
      $region31: #{distance_points_3d.1} parent=23 // pred_region
        _
      $region32: #{distance_points_3d.1} parent=23 // pred_fallthru
        _
    $region24: #{distance_points_3d.1} parent=5 // pred_fallthru
      _
    %p366 = scmp.le.s32.totalorder 2, %s14
    // Predicated region
    $region33: #{distance_points_3d.1} parent=5 // pred_check
      %p367 = pneg %p366
    $region34: #{distance_points_3d.1} parent=5 // pred_check_branch
      %369 = sbr.rel (%p367) target = $region36
    $region35: #{distance_points_3d.1} parent=5 // pred_region
      %s370 = ssub.s32 %s14, 2
      // Predicated region
      $region37: #{distance_points_3d.1} parent=35 // pred_check
        %p371 = pneg %p94
      $region38: #{distance_points_3d.1} parent=35 // pred_check_branch
        %373 = sbr.rel (%p371) target = $region40
      $region39: #{distance_points_3d.1} parent=35 // pred_region
        %p374 = scmp.lt.s32.totalorder %s27, 1
        %s375 = scalar_select %p374, %s27, 1
        %p376 = scmp.lt.s32.totalorder %s28, 0
        %s377 = scalar_select %p376, %s28, 0
        %s378 = sadd.s32 %s377, %s375
        %s379 = smul.addr %s378, 8
        %s380 = scalar_lea.vmem %s2, %s379
      $region40: #{distance_points_3d.1} parent=35 // pred_fallthru
        _
    $region36: #{distance_points_3d.1} parent=5 // pred_fallthru
      _
  $region6: #{distance_points_3d.1} parent=0 // loop_footer
    %s18 = sadd.s32 1, %s14
  $region7: #{distance_points_3d.1} parent=0 // loop_footer_branch
    %13 = sbr.rel target = $region3
  $region8: #{distance_points_3d.1} parent=0 // loop_exit
    _

</llo_original>
